<compile_context>
chip_gen: v7x
topology: tpu7x:2x2x1
jax: 0.10.0
libtpu: 0.0.40
codegen_flags: <defaults>
</compile_context>

<pallas_src>
import numpy as np
import jax
import jax.numpy as jnp
from jax.experimental import pallas as pl
from jax.experimental.pallas import tpu as pltpu


def _round_up(v, m):
    return (v + m - 1) // m * m


# ----------------------------- Pallas kernel --------------------------------

def _make_fused_kernel(m1p, m2p, m2, n_taps2, cout):
    """Fused conv5x5+pool+relu -> conv3x3+pool+relu for one image."""
    rows2 = 4 * m2p   # 4 pool phases x (padded) pooled pixels of stage 2

    def kernel(p1_ref, w1_ref, b1_ref, s2_ref, w2_ref, b2_ref, o_ref):
        # ---- stage 1: 5x5 conv as ONE GEMM over all 4 pool phases ----------
        # p1_ref: (4*m1p, k1p) phase-major im2col patches; w1_ref: (k1p, 24)
        y1 = jnp.dot(p1_ref[...], w1_ref[...],
                     preferred_element_type=jnp.float32)            # (4*m1p, 24)
        a = y1[0:m1p]                                               # phase max
        for ph in range(1, 4):
            a = jnp.maximum(a, y1[ph * m1p:(ph + 1) * m1p])
        a = jnp.maximum(a + b1_ref[...], 0.0)                       # bias + relu

        # ---- stage 2: 3x3 conv from the VMEM-resident activation -----------
        # s2_ref is a constant 0/1 matrix: one GEMM gathers the 9 shifted
        # copies of `a` (tap-major rows); then 9 tap GEMMs accumulate the conv.
        d = jnp.dot(s2_ref[...], a, preferred_element_type=jnp.float32)  # (9*rows2, 24)
        y2 = jnp.dot(d[0:rows2], w2_ref[0], preferred_element_type=jnp.float32)
        for t in range(1, n_taps2):
            y2 = y2 + jnp.dot(d[t * rows2:(t + 1) * rows2], w2_ref[t],
                              preferred_element_type=jnp.float32)   # (rows2, cout)
        r = y2[0:m2p]                                               # phase max
        for ph in range(1, 4):
            r = jnp.maximum(r, y2[ph * m2p:(ph + 1) * m2p])
        out = jnp.maximum(r[0:m2] + b2_ref[...], 0.0)               # bias + relu
        o_ref[...] = out.astype(o_ref.dtype)

    return kernel


# ------------------------------ glue (JAX) -----------------------------------

def _stage1_patches(x, ksz, m_pad, k_pad):
    """x: (N,H,W,C) NHWC -> (N, 4*m_pad, k_pad) phase-major im2col.

    Row  phase*m_pad + (i*PW + j)  is the im2col row of conv-output pixel
    (2i+p, 2j+q), phase = 2p+q (the (p,q) corner of 2x2 pool window (i,j)).
    Rows m..m_pad-1 of each phase block and cols k..k_pad-1 are zero padding."""
    n, h, w, c = x.shape
    oh, ow = h - ksz + 1, w - ksz + 1
    ph_, pw_ = oh // 2, ow // 2
    m, k = ph_ * pw_, ksz * ksz * c
    blocks = []
    for p in range(2):
        for q in range(2):
            taps = []
            for kh in range(ksz):
                for kw in range(ksz):
                    taps.append(x[:, p + kh:p + kh + 2 * ph_:2,
                                     q + kw:q + kw + 2 * pw_:2, :])   # (N,PH,PW,C)
            g = jnp.stack(taps, axis=3).reshape(n, m, k)              # (N, M, K)
            blocks.append(jnp.pad(g, ((0, 0), (0, m_pad - m), (0, k_pad - k))))
    return jnp.concatenate(blocks, axis=1)                            # (N, 4*m_pad, k_pad)


def _stage2_gather_matrix(ph1, pw1, ph2, pw2, ksz, m1p, m2p):
    """Constant 0/1 matrix S (ksz*ksz*4*m2p, m1p).

    (S @ A)[t*4*m2p + phase*m2p + pix] is the stage-1 activation row needed by
    3x3 tap t for pooled output pixel `pix` of pool phase `phase`.  All-zero
    rows / never-selected columns implement the 8-row padding."""
    s = np.zeros((ksz * ksz * 4 * m2p, m1p), np.float32)
    for kh in range(ksz):
        for kw in range(ksz):
            t = kh * ksz + kw
            for p in range(2):
                for q in range(2):
                    phase = 2 * p + q
                    for i in range(ph2):
                        for j in range(pw2):
                            r = t * (4 * m2p) + phase * m2p + (i * pw2 + j)
                            src = (2 * i + p + kh) * pw1 + (2 * j + q + kw)
                            s[r, src] = 1.0
    return jnp.asarray(s)


@jax.jit
def features_detector(x_nchw, w1_oihw, b1, w2_oihw, b2):
    """Equivalent of FeaturesDetector.forward. NCHW in / NCHW out."""
    n, cin, h, w = x_nchw.shape
    c1 = w1_oihw.shape[0]                       # 24
    cout = w2_oihw.shape[0]
    k1sz, k2sz = w1_oihw.shape[2], w2_oihw.shape[2]   # 5, 3

    x = jnp.transpose(x_nchw, (0, 2, 3, 1))     # NCHW -> NHWC
    w1 = jnp.transpose(w1_oihw, (2, 3, 1, 0))   # OIHW -> HWIO (5,5,cin,c1)
    w2 = jnp.transpose(w2_oihw, (2, 3, 1, 0))   # (3,3,c1,cout)

    # geometry (valid conv, stride-2 2x2 max-pool with floor)
    ph1, pw1 = (h - k1sz + 1) // 2, (w - k1sz + 1) // 2        # 6, 6
    ph2, pw2 = (ph1 - k2sz + 1) // 2, (pw1 - k2sz + 1) // 2    # 2, 2
    m1, m2 = ph1 * pw1, ph2 * pw2
    m1p, m2p = _round_up(m1, 8), _round_up(m2, 8)              # sublane-aligned rows
    k1 = k1sz * k1sz * cin
    k1p = _round_up(k1, 128)                                    # lane-aligned K
    n_taps2 = k2sz * k2sz

    patches1 = _stage1_patches(x, k1sz, m1p, k1p)               # (n, 4*m1p, k1p)
    w1_mat = jnp.pad(w1.reshape(k1, c1), ((0, k1p - k1), (0, 0)))
    s2 = _stage2_gather_matrix(ph1, pw1, ph2, pw2, k2sz, m1p, m2p)
    w2_taps = w2.reshape(n_taps2, c1, cout)

    kernel = _make_fused_kernel(m1p, m2p, m2, n_taps2, cout)
    out = pl.pallas_call(
        kernel,
        out_shape=jax.ShapeDtypeStruct((n, m2, cout), x.dtype),
        grid=(n,),
        in_specs=[
            pl.BlockSpec((None, 4 * m1p, k1p), lambda i: (i, 0, 0)),      # patches (per image)
            pl.BlockSpec((k1p, c1), lambda i: (0, 0)),                    # w1
            pl.BlockSpec((1, c1), lambda i: (0, 0)),                      # b1
            pl.BlockSpec((n_taps2 * 4 * m2p, m1p), lambda i: (0, 0)),     # stage-2 gather
            pl.BlockSpec((n_taps2, c1, cout), lambda i: (0, 0, 0)),       # w2 per tap
            pl.BlockSpec((1, cout), lambda i: (0, 0)),                    # b2
        ],
        out_specs=pl.BlockSpec((None, m2, cout), lambda i: (i, 0, 0)),
        compiler_params=pltpu.CompilerParams(dimension_semantics=("parallel",)),
    )(patches1, w1_mat, b1.reshape(1, c1), s2, w2_taps, b2.reshape(1, cout))

    out = out.reshape(n, ph2, pw2, cout)
    return jnp.transpose(out, (0, 3, 1, 2))                     # NHWC -> NCHW


# --------------------------- pure-JAX reference -------------------------------

def _reference_forward(x_nchw, w1, b1, w2, b2):
    def conv(x, w, b):
        y = jax.lax.conv_general_dilated(
            x, w, window_strides=(1, 1), padding="VALID",
            dimension_numbers=("NCHW", "OIHW", "NCHW"))
        return y + b[None, :, None, None]

    def pool(x):
        return jax.lax.reduce_window(
            x, -jnp.inf, jax.lax.max, (1, 1, 2, 2), (1, 1, 2, 2), "VALID")

    x = jnp.maximum(pool(conv(x_nchw, w1, b1)), 0.0)
    x = jnp.maximum(pool(conv(x, w2, b2)), 0.0)
    return x


# ---------------------------------- main --------------------------------------

if __name__ == "__main__":
    key = jax.random.PRNGKey(0)
    k_x, k_w1, k_b1, k_w2, k_b2 = jax.random.split(key, 5)

    N, CIN, H, W = 2, 4, 16, 16          # small NCHW input
    C1, COUT = 24, 8                     # conv1 -> 24 channels, conv2 -> out_channels=8

    x = jax.random.normal(k_x, (N, CIN, H, W), jnp.float32)
    # Deterministic synthetic parameters (PyTorch OIHW layout), not a checkpoint.
    w1 = 0.1 * jax.random.normal(k_w1, (C1, CIN, 5, 5), jnp.float32)
    b1 = 0.1 * jax.random.normal(k_b1, (C1,), jnp.float32)
    w2 = 0.1 * jax.random.normal(k_w2, (COUT, C1, 3, 3), jnp.float32)
    b2 = 0.1 * jax.random.normal(k_b2, (COUT,), jnp.float32)

    out = jax.block_until_ready(features_detector(x, w1, b1, w2, b2))
    ref = _reference_forward(x, w1, b1, w2, b2)

    assert out.shape == (N, COUT, 2, 2), out.shape
    if not jnp.allclose(out, ref, atol=2e-2, rtol=2e-2):
        raise AssertionError(
            f"mismatch vs reference: max abs err = {jnp.max(jnp.abs(out - ref))}")

    print("KERNEL_OK")
</pallas_src>

<mosaic_0001>
module attributes {stable_mosaic.version = 11 : i64} {
  func.func @kernel(%arg0: i32, %arg1: memref<1x160x128xf32, #tpu.memory_space<vmem>>, %arg2: memref<128x24xf32, #tpu.memory_space<vmem>>, %arg3: memref<1x24xf32, #tpu.memory_space<vmem>>, %arg4: memref<288x40xf32, #tpu.memory_space<vmem>>, %arg5: memref<9x24x8xf32, #tpu.memory_space<vmem>>, %arg6: memref<1x8xf32, #tpu.memory_space<vmem>>, %arg7: memref<1x4x8xf32, #tpu.memory_space<vmem>>) attributes {dimension_semantics = [#tpu.dimension_semantics<parallel>], iteration_bounds = array<i64: 2>, scalar_prefetch = 0 : i64, scratch_operands = 0 : i64, tpu.core_type = #tpu.core_type<tc>, window_params = [{transform_indices = @transform_0, window_bounds = array<i64: 1, 160, 128>}, {pipeline_mode = #tpu.pipeline_mode<synchronous>, transform_indices = @transform_1, window_bounds = array<i64: 128, 24>}, {pipeline_mode = #tpu.pipeline_mode<synchronous>, transform_indices = @transform_2, window_bounds = array<i64: 1, 24>}, {pipeline_mode = #tpu.pipeline_mode<synchronous>, transform_indices = @transform_3, window_bounds = array<i64: 288, 40>}, {pipeline_mode = #tpu.pipeline_mode<synchronous>, transform_indices = @transform_4, window_bounds = array<i64: 9, 24, 8>}, {pipeline_mode = #tpu.pipeline_mode<synchronous>, transform_indices = @transform_5, window_bounds = array<i64: 1, 8>}, {transform_indices = @transform_6, window_bounds = array<i64: 1, 4, 8>}]} {
    %c0 = arith.constant 0 : index
    %c0_0 = arith.constant 0 : index
    %c0_1 = arith.constant 0 : index
    %0 = vector.load %arg1[%c0, %c0_0, %c0_1] : memref<1x160x128xf32, #tpu.memory_space<vmem>>, vector<1x160x128xf32>
    %1 = vector.shape_cast %0 : vector<1x160x128xf32> to vector<160x128xf32>
    %c0_2 = arith.constant 0 : index
    %c0_3 = arith.constant 0 : index
    %2 = vector.load %arg2[%c0_2, %c0_3] : memref<128x24xf32, #tpu.memory_space<vmem>>, vector<128x24xf32>
    %cst = arith.constant dense<0.000000e+00> : vector<160x24xf32>
    %3 = tpu.matmul %1, %2, %cst {dimension_numbers = #tpu.dot_dimension_numbers<[1], [0], [0], [1], [0, 0, 1, 1], [], []>} : vector<160x128xf32>, vector<128x24xf32>, vector<160x24xf32> -> vector<160x24xf32>
    %4 = vector.extract_strided_slice %3 {offsets = [0, 0], sizes = [40, 24], strides = [1, 1]} : vector<160x24xf32> to vector<40x24xf32>
    %5 = vector.extract_strided_slice %3 {offsets = [40, 0], sizes = [40, 24], strides = [1, 1]} : vector<160x24xf32> to vector<40x24xf32>
    %6 = arith.maximumf %4, %5 : vector<40x24xf32>
    %7 = vector.extract_strided_slice %3 {offsets = [80, 0], sizes = [40, 24], strides = [1, 1]} : vector<160x24xf32> to vector<40x24xf32>
    %8 = arith.maximumf %6, %7 : vector<40x24xf32>
    %9 = vector.extract_strided_slice %3 {offsets = [120, 0], sizes = [40, 24], strides = [1, 1]} : vector<160x24xf32> to vector<40x24xf32>
    %10 = arith.maximumf %8, %9 : vector<40x24xf32>
    %c0_4 = arith.constant 0 : index
    %c0_5 = arith.constant 0 : index
    %11 = vector.load %arg3[%c0_4, %c0_5] : memref<1x24xf32, #tpu.memory_space<vmem>>, vector<1x24xf32>
    %12 = vector.broadcast %11 : vector<1x24xf32> to vector<40x24xf32>
    %13 = arith.addf %10, %12 : vector<40x24xf32>
    %cst_6 = arith.constant 0.000000e+00 : f32
    %14 = vector.broadcast %cst_6 : f32 to vector<40x24xf32>
    %15 = arith.maximumf %13, %14 : vector<40x24xf32>
    %c0_7 = arith.constant 0 : index
    %c0_8 = arith.constant 0 : index
    %16 = vector.load %arg4[%c0_7, %c0_8] : memref<288x40xf32, #tpu.memory_space<vmem>>, vector<288x40xf32>
    %cst_9 = arith.constant dense<0.000000e+00> : vector<288x24xf32>
    %17 = tpu.matmul %16, %15, %cst_9 {dimension_numbers = #tpu.dot_dimension_numbers<[1], [0], [0], [1], [0, 0, 1, 1], [], []>} : vector<288x40xf32>, vector<40x24xf32>, vector<288x24xf32> -> vector<288x24xf32>
    %18 = vector.extract_strided_slice %17 {offsets = [0, 0], sizes = [32, 24], strides = [1, 1]} : vector<288x24xf32> to vector<32x24xf32>
    %c0_10 = arith.constant 0 : index
    %c0_11 = arith.constant 0 : index
    %c0_12 = arith.constant 0 : index
    %19 = vector.load %arg5[%c0_10, %c0_11, %c0_12] : memref<9x24x8xf32, #tpu.memory_space<vmem>>, vector<1x24x8xf32>
    %20 = vector.shape_cast %19 : vector<1x24x8xf32> to vector<24x8xf32>
    %cst_13 = arith.constant dense<0.000000e+00> : vector<32x8xf32>
    %21 = tpu.matmul %18, %20, %cst_13 {dimension_numbers = #tpu.dot_dimension_numbers<[1], [0], [0], [1], [0, 0, 1, 1], [], []>} : vector<32x24xf32>, vector<24x8xf32>, vector<32x8xf32> -> vector<32x8xf32>
    %22 = vector.extract_strided_slice %17 {offsets = [32, 0], sizes = [32, 24], strides = [1, 1]} : vector<288x24xf32> to vector<32x24xf32>
    %c1 = arith.constant 1 : index
    %c0_14 = arith.constant 0 : index
    %c0_15 = arith.constant 0 : index
    %23 = vector.load %arg5[%c1, %c0_14, %c0_15] : memref<9x24x8xf32, #tpu.memory_space<vmem>>, vector<1x24x8xf32>
    %24 = vector.shape_cast %23 : vector<1x24x8xf32> to vector<24x8xf32>
    %cst_16 = arith.constant dense<0.000000e+00> : vector<32x8xf32>
    %25 = tpu.matmul %22, %24, %cst_16 {dimension_numbers = #tpu.dot_dimension_numbers<[1], [0], [0], [1], [0, 0, 1, 1], [], []>} : vector<32x24xf32>, vector<24x8xf32>, vector<32x8xf32> -> vector<32x8xf32>
    %26 = arith.addf %21, %25 : vector<32x8xf32>
    %27 = vector.extract_strided_slice %17 {offsets = [64, 0], sizes = [32, 24], strides = [1, 1]} : vector<288x24xf32> to vector<32x24xf32>
    %c2 = arith.constant 2 : index
    %c0_17 = arith.constant 0 : index
    %c0_18 = arith.constant 0 : index
    %28 = vector.load %arg5[%c2, %c0_17, %c0_18] : memref<9x24x8xf32, #tpu.memory_space<vmem>>, vector<1x24x8xf32>
    %29 = vector.shape_cast %28 : vector<1x24x8xf32> to vector<24x8xf32>
    %cst_19 = arith.constant dense<0.000000e+00> : vector<32x8xf32>
    %30 = tpu.matmul %27, %29, %cst_19 {dimension_numbers = #tpu.dot_dimension_numbers<[1], [0], [0], [1], [0, 0, 1, 1], [], []>} : vector<32x24xf32>, vector<24x8xf32>, vector<32x8xf32> -> vector<32x8xf32>
    %31 = arith.addf %26, %30 : vector<32x8xf32>
    %32 = vector.extract_strided_slice %17 {offsets = [96, 0], sizes = [32, 24], strides = [1, 1]} : vector<288x24xf32> to vector<32x24xf32>
    %c3 = arith.constant 3 : index
    %c0_20 = arith.constant 0 : index
    %c0_21 = arith.constant 0 : index
    %33 = vector.load %arg5[%c3, %c0_20, %c0_21] : memref<9x24x8xf32, #tpu.memory_space<vmem>>, vector<1x24x8xf32>
    %34 = vector.shape_cast %33 : vector<1x24x8xf32> to vector<24x8xf32>
    %cst_22 = arith.constant dense<0.000000e+00> : vector<32x8xf32>
    %35 = tpu.matmul %32, %34, %cst_22 {dimension_numbers = #tpu.dot_dimension_numbers<[1], [0], [0], [1], [0, 0, 1, 1], [], []>} : vector<32x24xf32>, vector<24x8xf32>, vector<32x8xf32> -> vector<32x8xf32>
    %36 = arith.addf %31, %35 : vector<32x8xf32>
    %37 = vector.extract_strided_slice %17 {offsets = [128, 0], sizes = [32, 24], strides = [1, 1]} : vector<288x24xf32> to vector<32x24xf32>
    %c4 = arith.constant 4 : index
    %c0_23 = arith.constant 0 : index
    %c0_24 = arith.constant 0 : index
    %38 = vector.load %arg5[%c4, %c0_23, %c0_24] : memref<9x24x8xf32, #tpu.memory_space<vmem>>, vector<1x24x8xf32>
    %39 = vector.shape_cast %38 : vector<1x24x8xf32> to vector<24x8xf32>
    %cst_25 = arith.constant dense<0.000000e+00> : vector<32x8xf32>
    %40 = tpu.matmul %37, %39, %cst_25 {dimension_numbers = #tpu.dot_dimension_numbers<[1], [0], [0], [1], [0, 0, 1, 1], [], []>} : vector<32x24xf32>, vector<24x8xf32>, vector<32x8xf32> -> vector<32x8xf32>
    %41 = arith.addf %36, %40 : vector<32x8xf32>
    %42 = vector.extract_strided_slice %17 {offsets = [160, 0], sizes = [32, 24], strides = [1, 1]} : vector<288x24xf32> to vector<32x24xf32>
    %c5 = arith.constant 5 : index
    %c0_26 = arith.constant 0 : index
    %c0_27 = arith.constant 0 : index
    %43 = vector.load %arg5[%c5, %c0_26, %c0_27] : memref<9x24x8xf32, #tpu.memory_space<vmem>>, vector<1x24x8xf32>
    %44 = vector.shape_cast %43 : vector<1x24x8xf32> to vector<24x8xf32>
    %cst_28 = arith.constant dense<0.000000e+00> : vector<32x8xf32>
    %45 = tpu.matmul %42, %44, %cst_28 {dimension_numbers = #tpu.dot_dimension_numbers<[1], [0], [0], [1], [0, 0, 1, 1], [], []>} : vector<32x24xf32>, vector<24x8xf32>, vector<32x8xf32> -> vector<32x8xf32>
    %46 = arith.addf %41, %45 : vector<32x8xf32>
    %47 = vector.extract_strided_slice %17 {offsets = [192, 0], sizes = [32, 24], strides = [1, 1]} : vector<288x24xf32> to vector<32x24xf32>
    %c6 = arith.constant 6 : index
    %c0_29 = arith.constant 0 : index
    %c0_30 = arith.constant 0 : index
    %48 = vector.load %arg5[%c6, %c0_29, %c0_30] : memref<9x24x8xf32, #tpu.memory_space<vmem>>, vector<1x24x8xf32>
    %49 = vector.shape_cast %48 : vector<1x24x8xf32> to vector<24x8xf32>
    %cst_31 = arith.constant dense<0.000000e+00> : vector<32x8xf32>
    %50 = tpu.matmul %47, %49, %cst_31 {dimension_numbers = #tpu.dot_dimension_numbers<[1], [0], [0], [1], [0, 0, 1, 1], [], []>} : vector<32x24xf32>, vector<24x8xf32>, vector<32x8xf32> -> vector<32x8xf32>
    %51 = arith.addf %46, %50 : vector<32x8xf32>
    %52 = vector.extract_strided_slice %17 {offsets = [224, 0], sizes = [32, 24], strides = [1, 1]} : vector<288x24xf32> to vector<32x24xf32>
    %c7 = arith.constant 7 : index
    %c0_32 = arith.constant 0 : index
    %c0_33 = arith.constant 0 : index
    %53 = vector.load %arg5[%c7, %c0_32, %c0_33] : memref<9x24x8xf32, #tpu.memory_space<vmem>>, vector<1x24x8xf32>
    %54 = vector.shape_cast %53 : vector<1x24x8xf32> to vector<24x8xf32>
    %cst_34 = arith.constant dense<0.000000e+00> : vector<32x8xf32>
    %55 = tpu.matmul %52, %54, %cst_34 {dimension_numbers = #tpu.dot_dimension_numbers<[1], [0], [0], [1], [0, 0, 1, 1], [], []>} : vector<32x24xf32>, vector<24x8xf32>, vector<32x8xf32> -> vector<32x8xf32>
    %56 = arith.addf %51, %55 : vector<32x8xf32>
    %57 = vector.extract_strided_slice %17 {offsets = [256, 0], sizes = [32, 24], strides = [1, 1]} : vector<288x24xf32> to vector<32x24xf32>
    %c8 = arith.constant 8 : index
    %c0_35 = arith.constant 0 : index
    %c0_36 = arith.constant 0 : index
    %58 = vector.load %arg5[%c8, %c0_35, %c0_36] : memref<9x24x8xf32, #tpu.memory_space<vmem>>, vector<1x24x8xf32>
    %59 = vector.shape_cast %58 : vector<1x24x8xf32> to vector<24x8xf32>
    %cst_37 = arith.constant dense<0.000000e+00> : vector<32x8xf32>
    %60 = tpu.matmul %57, %59, %cst_37 {dimension_numbers = #tpu.dot_dimension_numbers<[1], [0], [0], [1], [0, 0, 1, 1], [], []>} : vector<32x24xf32>, vector<24x8xf32>, vector<32x8xf32> -> vector<32x8xf32>
    %61 = arith.addf %56, %60 : vector<32x8xf32>
    %62 = vector.extract_strided_slice %61 {offsets = [0, 0], sizes = [8, 8], strides = [1, 1]} : vector<32x8xf32> to vector<8x8xf32>
    %63 = vector.extract_strided_slice %61 {offsets = [8, 0], sizes = [8, 8], strides = [1, 1]} : vector<32x8xf32> to vector<8x8xf32>
    %64 = arith.maximumf %62, %63 : vector<8x8xf32>
    %65 = vector.extract_strided_slice %61 {offsets = [16, 0], sizes = [8, 8], strides = [1, 1]} : vector<32x8xf32> to vector<8x8xf32>
    %66 = arith.maximumf %64, %65 : vector<8x8xf32>
    %67 = vector.extract_strided_slice %61 {offsets = [24, 0], sizes = [8, 8], strides = [1, 1]} : vector<32x8xf32> to vector<8x8xf32>
    %68 = arith.maximumf %66, %67 : vector<8x8xf32>
    %69 = vector.extract_strided_slice %68 {offsets = [0, 0], sizes = [4, 8], strides = [1, 1]} : vector<8x8xf32> to vector<4x8xf32>
    %c0_38 = arith.constant 0 : index
    %c0_39 = arith.constant 0 : index
    %70 = vector.load %arg6[%c0_38, %c0_39] : memref<1x8xf32, #tpu.memory_space<vmem>>, vector<1x8xf32>
    %71 = vector.broadcast %70 : vector<1x8xf32> to vector<4x8xf32>
    %72 = arith.addf %69, %71 : vector<4x8xf32>
    %cst_40 = arith.constant 0.000000e+00 : f32
    %73 = vector.broadcast %cst_40 : f32 to vector<4x8xf32>
    %74 = arith.maximumf %72, %73 : vector<4x8xf32>
    %c0_41 = arith.constant 0 : index
    %c0_42 = arith.constant 0 : index
    %c0_43 = arith.constant 0 : index
    %75 = vector.load %arg7[%c0_41, %c0_42, %c0_43] : memref<1x4x8xf32, #tpu.memory_space<vmem>>, vector<1x4x8xf32>
    %76 = vector.shape_cast %75 : vector<1x4x8xf32> to vector<4x8xf32>
    %77 = vector.shape_cast %74 : vector<4x8xf32> to vector<1x4x8xf32>
    tpu.vector_store %arg7[%c0_41, %c0_42, %c0_43], %77 {strides = array<i32>} : memref<1x4x8xf32, #tpu.memory_space<vmem>>, vector<1x4x8xf32>,
    return
  }
  func.func @transform_0(%arg0: i32) -> (i32, i32, i32) {
    %c0_i32 = arith.constant 0 : i32
    %c0_i32_0 = arith.constant 0 : i32
    %c0_i32_1 = arith.constant 0 : i32
    return %arg0, %c0_i32, %c0_i32_0 : i32, i32, i32
  }
  func.func @transform_1(%arg0: i32) -> (i32, i32) {
    %c0_i32 = arith.constant 0 : i32
    %c0_i32_0 = arith.constant 0 : i32
    %c0_i32_1 = arith.constant 0 : i32
    return %c0_i32, %c0_i32_0 : i32, i32
  }
  func.func @transform_2(%arg0: i32) -> (i32, i32) {
    %c0_i32 = arith.constant 0 : i32
    %c0_i32_0 = arith.constant 0 : i32
    %c0_i32_1 = arith.constant 0 : i32
    return %c0_i32, %c0_i32_0 : i32, i32
  }
  func.func @transform_3(%arg0: i32) -> (i32, i32) {
    %c0_i32 = arith.constant 0 : i32
    %c0_i32_0 = arith.constant 0 : i32
    %c0_i32_1 = arith.constant 0 : i32
    return %c0_i32, %c0_i32_0 : i32, i32
  }
  func.func @transform_4(%arg0: i32) -> (i32, i32, i32) {
    %c0_i32 = arith.constant 0 : i32
    %c0_i32_0 = arith.constant 0 : i32
    %c0_i32_1 = arith.constant 0 : i32
    %c0_i32_2 = arith.constant 0 : i32
    return %c0_i32, %c0_i32_0, %c0_i32_1 : i32, i32, i32
  }
  func.func @transform_5(%arg0: i32) -> (i32, i32) {
    %c0_i32 = arith.constant 0 : i32
    %c0_i32_0 = arith.constant 0 : i32
    %c0_i32_1 = arith.constant 0 : i32
    return %c0_i32, %c0_i32_0 : i32, i32
  }
  func.func @transform_6(%arg0: i32) -> (i32, i32, i32) {
    %c0_i32 = arith.constant 0 : i32
    %c0_i32_0 = arith.constant 0 : i32
    %c0_i32_1 = arith.constant 0 : i32
    return %arg0, %c0_i32, %c0_i32_0 : i32, i32, i32
  }
}

</mosaic_0001>

<llo_original>
// kernel: features_detector.1
$region0: #{features_detector.1}
  #allocation0 [shape = 'u32[]', space=smem, size = 0x4, offset = 0x4, fixed_abs, tag = 'smem constant byte address 0x4 - core index']
  #allocation1 [shape = 'u32[144,128]{1,0:T(1,128)}', space=vmem, size = 0x12000, scoped, tag = 'internal scratch']
  %s0 = inlined_call_operand.vmem [shape: f32[2,160,128], index: 0, kind: input, shape index: {}]
  %s1 = inlined_call_operand.vmem [shape: f32[128,24], index: 1, kind: input, shape index: {}]
  %s2 = inlined_call_operand.vmem [shape: f32[1,24], index: 2, kind: input, shape index: {}]
  %s3 = inlined_call_operand.vmem [shape: f32[288,40], index: 3, kind: input, shape index: {}]
  %s4 = inlined_call_operand.vmem [shape: f32[9,24,8], index: 4, kind: input, shape index: {}]
  %s5 = inlined_call_operand.vmem [shape: f32[1,8], index: 5, kind: input, shape index: {}]
  %s6 = inlined_call_operand.hbm [shape: f32[2,4,8], index: 6, kind: output, shape index: {}]
  %s7 = sld [smem:[#allocation0]]
  $region57: #{features_detector.1} parent=0
    _
  %s9 = ssub.s32 1, %s7
  %s10 = scalar_select 0, %s9, %s7
  $region1: #{features_detector.1} parent=0
    #allocation2 [shape = 'u8[4096]{0}', space=vmem, size = 0x1000, scoped, tag = 'output window, operand 0']
    #allocation3 [shape = 's32[2]{0}', space=sflag, size = 0x8, scoped, tag = 'scoped memory for features_detector.1']
    %11 = vsyncpa [#allocation3], 0
    %s12 = scalar_lea.sflag [#allocation3], 1
    %13 = vsyncpa %s12, 0
    loop: start=0, step=1, limit=4
    $region2: #{features_detector.1} parent=1 // loop_pre_header
      _
    $region3: #{features_detector.1} parent=1 // loop_header
      %s15 = sphi 0, %s19
      %p16 = scmp.ge.s32.totalorder %s15, 4
      %s25 = sphi 0, %s27
      %s28 = sphi 0, %s25
      %s29 = sphi 0, %s28
      %s45 = sphi 0, %s29
      %s49 = sphi 0, %s49
      %s51 = sphi 0, %s49
      %s52 = sphi 0, %s51
      %s66 = sphi 0, %s52
      %s70 = sphi 0, %s70
      %s72 = sphi 0, %s70
      %s73 = sphi 0, %s72
      %s87 = sphi 0, %s73
      %s91 = sphi 0, %s91
      %s93 = sphi 0, %s91
      %s94 = sphi 0, %s93
      %s108 = sphi 0, %s94
      %s112 = sphi 0, %s112
      %s114 = sphi 0, %s112
      %s115 = sphi 0, %s114
      %s129 = sphi 0, %s115
      %s133 = sphi 0, %s133
      %s135 = sphi 0, %s133
      %s136 = sphi 0, %s135
      %s150 = sphi 0, %s136
      %s156 = sphi 0, %s158
      %s159 = sphi 0, %s156
      %s160 = sphi 0, %s159
      %s176 = sphi 0, %s160
    $region4: #{features_detector.1} parent=1 // loop_header_branch
      %18 = sbr.rel (%p16) target = $region8
    $region5: #{features_detector.1} parent=1 // loop_body
      %s20 = ssub.s32 %s15, 1
      %s21 = ssub.s32 %s15, 2
      %s22 = sadd.s32 %s15, 1
      %s23 = ssub.s32 %s15, %s22
      %p24 = scmp.eq.s32.totalorder %s23, 0
      %s26 = sadd.s32 %s25, 1
      %s27 = scalar_select %p24, %s25, %s26
      %p30 = pneg %p24
      %p31 = scmp.eq.s32.totalorder %s15, 1
      %p32 = por %p30, %p31
      %p33 = scmp.ne.s32.totalorder %s25, %s28
      %p34 = scmp.eq.s32.totalorder %s15, 0
      %p35 = por %p33, %p34
      %p36 = scmp.ne.s32.totalorder %s25, %s28
      %p37 = scmp.eq.s32.totalorder %s20, 1
      %p38 = por %p36, %p37
      %p39 = scmp.ne.s32.totalorder %s28, %s29
      %p40 = scmp.eq.s32.totalorder %s20, 0
      %p41 = por %p39, %p40
      %p42 = scmp.ne.s32.totalorder %s28, %s29
      %p43 = scmp.eq.s32.totalorder %s21, 1
      %p44 = por %p42, %p43
      %p46 = scmp.ne.s32.totalorder %s29, %s45
      %p47 = scmp.eq.s32.totalorder %s21, 0
      %p48 = por %p46, %p47
      %s50 = sadd.s32 %s49, 1
      %p53 = scmp.eq.s32.totalorder %s15, 1
      %p54 = scmp.ne.s32.totalorder %s49, %s51
      %p55 = scmp.eq.s32.totalorder %s15, 0
      %p56 = por %p54, %p55
      %p57 = scmp.ne.s32.totalorder %s49, %s51
      %p58 = scmp.eq.s32.totalorder %s20, 1
      %p59 = por %p57, %p58
      %p60 = scmp.ne.s32.totalorder %s51, %s52
      %p61 = scmp.eq.s32.totalorder %s20, 0
      %p62 = por %p60, %p61
      %p63 = scmp.ne.s32.totalorder %s51, %s52
      %p64 = scmp.eq.s32.totalorder %s21, 1
      %p65 = por %p63, %p64
      %p67 = scmp.ne.s32.totalorder %s52, %s66
      %p68 = scmp.eq.s32.totalorder %s21, 0
      %p69 = por %p67, %p68
      %s71 = sadd.s32 %s70, 1
      %p74 = scmp.eq.s32.totalorder %s15, 1
      %p75 = scmp.ne.s32.totalorder %s70, %s72
      %p76 = scmp.eq.s32.totalorder %s15, 0
      %p77 = por %p75, %p76
      %p78 = scmp.ne.s32.totalorder %s70, %s72
      %p79 = scmp.eq.s32.totalorder %s20, 1
      %p80 = por %p78, %p79
      %p81 = scmp.ne.s32.totalorder %s72, %s73
      %p82 = scmp.eq.s32.totalorder %s20, 0
      %p83 = por %p81, %p82
      %p84 = scmp.ne.s32.totalorder %s72, %s73
      %p85 = scmp.eq.s32.totalorder %s21, 1
      %p86 = por %p84, %p85
      %p88 = scmp.ne.s32.totalorder %s73, %s87
      %p89 = scmp.eq.s32.totalorder %s21, 0
      %p90 = por %p88, %p89
      %s92 = sadd.s32 %s91, 1
      %p95 = scmp.eq.s32.totalorder %s15, 1
      %p96 = scmp.ne.s32.totalorder %s91, %s93
      %p97 = scmp.eq.s32.totalorder %s15, 0
      %p98 = por %p96, %p97
      %p99 = scmp.ne.s32.totalorder %s91, %s93
      %p100 = scmp.eq.s32.totalorder %s20, 1
      %p101 = por %p99, %p100
      %p102 = scmp.ne.s32.totalorder %s93, %s94
      %p103 = scmp.eq.s32.totalorder %s20, 0
      %p104 = por %p102, %p103
      %p105 = scmp.ne.s32.totalorder %s93, %s94
      %p106 = scmp.eq.s32.totalorder %s21, 1
      %p107 = por %p105, %p106
      %p109 = scmp.ne.s32.totalorder %s94, %s108
      %p110 = scmp.eq.s32.totalorder %s21, 0
      %p111 = por %p109, %p110
      %s113 = sadd.s32 %s112, 1
      %p116 = scmp.eq.s32.totalorder %s15, 1
      %p117 = scmp.ne.s32.totalorder %s112, %s114
      %p118 = scmp.eq.s32.totalorder %s15, 0
      %p119 = por %p117, %p118
      %p120 = scmp.ne.s32.totalorder %s112, %s114
      %p121 = scmp.eq.s32.totalorder %s20, 1
      %p122 = por %p120, %p121
      %p123 = scmp.ne.s32.totalorder %s114, %s115
      %p124 = scmp.eq.s32.totalorder %s20, 0
      %p125 = por %p123, %p124
      %p126 = scmp.ne.s32.totalorder %s114, %s115
      %p127 = scmp.eq.s32.totalorder %s21, 1
      %p128 = por %p126, %p127
      %p130 = scmp.ne.s32.totalorder %s115, %s129
      %p131 = scmp.eq.s32.totalorder %s21, 0
      %p132 = por %p130, %p131
      %s134 = sadd.s32 %s133, 1
      %p137 = scmp.eq.s32.totalorder %s15, 1
      %p138 = scmp.ne.s32.totalorder %s133, %s135
      %p139 = scmp.eq.s32.totalorder %s15, 0
      %p140 = por %p138, %p139
      %p141 = scmp.ne.s32.totalorder %s133, %s135
      %p142 = scmp.eq.s32.totalorder %s20, 1
      %p143 = por %p141, %p142
      %p144 = scmp.ne.s32.totalorder %s135, %s136
      %p145 = scmp.eq.s32.totalorder %s20, 0
      %p146 = por %p144, %p145
      %p147 = scmp.ne.s32.totalorder %s135, %s136
      %p148 = scmp.eq.s32.totalorder %s21, 1
      %p149 = por %p147, %p148
      %p151 = scmp.ne.s32.totalorder %s136, %s150
      %p152 = scmp.eq.s32.totalorder %s21, 0
      %p153 = por %p151, %p152
      %s154 = ssub.s32 %s15, %s22
      %p155 = scmp.eq.s32.totalorder %s154, 0
      %s157 = sadd.s32 %s156, 1
      %s158 = scalar_select %p155, %s156, %s157
      %p161 = pneg %p155
      %p162 = scmp.eq.s32.totalorder %s15, 1
      %p163 = por %p161, %p162
      %p164 = scmp.ne.s32.totalorder %s156, %s159
      %p165 = scmp.eq.s32.totalorder %s15, 0
      %p166 = por %p164, %p165
      %p167 = scmp.ne.s32.totalorder %s156, %s159
      %p168 = scmp.eq.s32.totalorder %s20, 1
      %p169 = por %p167, %p168
      %p170 = scmp.ne.s32.totalorder %s159, %s160
      %p171 = scmp.eq.s32.totalorder %s20, 0
      %p172 = por %p170, %p171
      %p173 = scmp.ne.s32.totalorder %s159, %s160
      %p174 = scmp.eq.s32.totalorder %s21, 1
      %p175 = por %p173, %p174
      %p177 = scmp.ne.s32.totalorder %s160, %s176
      %p178 = scmp.eq.s32.totalorder %s21, 0
      %p179 = por %p177, %p178
      %p180 = scmp.le.s32.totalorder 1, %s15
      %p181 = scmp.lt.s32.totalorder %s15, 3
      %p182 = pnand %p180, %p181
      %p183 = pneg %p182
      // Predicated region
      $region9: #{features_detector.1} parent=5 // pred_check
        _
      $region10: #{features_detector.1} parent=5 // pred_check_branch
        %185 = sbr.rel (%p182) target = $region12
      $region11: #{features_detector.1} parent=5 // pred_region
        %s186 = ssub.s32 %s15, 1
        // Predicated region
        $region13: #{features_detector.1} parent=11 // pred_check
          %p187 = pneg %p62
        $region14: #{features_detector.1} parent=11 // pred_check_branch
          %189 = sbr.rel (%p187) target = $region16
        $region15: #{features_detector.1} parent=11 // pred_region
          _
        $region16: #{features_detector.1} parent=11 // pred_fallthru
          _
        // Predicated region
        $region17: #{features_detector.1} parent=11 // pred_check
          %p190 = pneg %p83
        $region18: #{features_detector.1} parent=11 // pred_check_branch
          %192 = sbr.rel (%p190) target = $region20
        $region19: #{features_detector.1} parent=11 // pred_region
          _
        $region20: #{features_detector.1} parent=11 // pred_fallthru
          _
        // Predicated region
        $region21: #{features_detector.1} parent=11 // pred_check
          %p193 = pneg %p104
        $region22: #{features_detector.1} parent=11 // pred_check_branch
          %195 = sbr.rel (%p193) target = $region24
        $region23: #{features_detector.1} parent=11 // pred_region
          _
        $region24: #{features_detector.1} parent=11 // pred_fallthru
          _
        // Predicated region
        $region25: #{features_detector.1} parent=11 // pred_check
          %p196 = pneg %p125
        $region26: #{features_detector.1} parent=11 // pred_check_branch
          %198 = sbr.rel (%p196) target = $region28
        $region27: #{features_detector.1} parent=11 // pred_region
          _
        $region28: #{features_detector.1} parent=11 // pred_fallthru
          _
        // Predicated region
        $region29: #{features_detector.1} parent=11 // pred_check
          %p199 = pneg %p146
        $region30: #{features_detector.1} parent=11 // pred_check_branch
          %201 = sbr.rel (%p199) target = $region32
        $region31: #{features_detector.1} parent=11 // pred_region
          _
        $region32: #{features_detector.1} parent=11 // pred_fallthru
          _
      $region12: #{features_detector.1} parent=5 // pred_fallthru
        _
      %p202 = scmp.lt.s32.totalorder %s15, 2
      // Predicated region
      $region33: #{features_detector.1} parent=5 // pred_check
        %p203 = pneg %p202
      $region34: #{features_detector.1} parent=5 // pred_check_branch
        %205 = sbr.rel (%p203) target = $region36
      $region35: #{features_detector.1} parent=5 // pred_region
        // Predicated region
        $region37: #{features_detector.1} parent=35 // pred_check
          %p206 = pneg %p35
        $region38: #{features_detector.1} parent=35 // pred_check_branch
          %208 = sbr.rel (%p206) target = $region40
        $region39: #{features_detector.1} parent=35 // pred_region
          %p209 = scmp.lt.s32.totalorder %s15, 1
          %s210 = scalar_select %p209, %s15, 1
          %s211 = smul.addr %s210, 20
          %s212 = smul.addr %s211, 8
          %s213 = scalar_lea.vmem %s0, %s212
        $region40: #{features_detector.1} parent=35 // pred_fallthru
          _
      $region36: #{features_detector.1} parent=5 // pred_fallthru
        _
      %p214 = scmp.le.s32.totalorder 1, %s15
      %p215 = scmp.lt.s32.totalorder %s15, 3
      %p216 = pnand %p214, %p215
      %p217 = pneg %p216
      // Predicated region
      $region41: #{features_detector.1} parent=5 // pred_check
        _
      $region42: #{features_detector.1} parent=5 // pred_check_branch
        %219 = sbr.rel (%p216) target = $region44
      $region43: #{features_detector.1} parent=5 // pred_region
        %s220 = ssub.s32 %s15, 1
        %p221 = scmp.lt.s32.totalorder %s20, 1
        %s222 = scalar_select %p221, %s20, 1
        %s223 = smul.addr %s222, 20
        %s224 = smul.addr %s223, 8
        %s225 = scalar_lea.vmem %s0, %s224
        %p226 = pneg %p41
        %p227 = pneg %p38
        %p228 = pneg %p62
        %p229 = pneg %p59
        %p230 = pneg %p83
        %p231 = pneg %p80
        %p232 = pneg %p104
        %p233 = pneg %p101
        %p234 = pneg %p125
        %p235 = pneg %p122
        %p236 = pneg %p146
        %p237 = pneg %p143
        %p238 = pneg %p172
        %p239 = pneg %p169
        %s240 = sand.u32 %s159, 1
        %s241 = scalar_lea.sflag [#allocation3], %s240
        %s242 = sand.u32 %s159, 1
        %s243 = smul.addr %s242, 4
        %s244 = scalar_lea.vmem [#allocation2], %s243
        %p245 = scmp.lt.s32.totalorder %s20, 1
        %s246 = scalar_select %p245, %s20, 1
        %s247 = smul.addr %s246, 20
        %s248 = smul.addr %s247, 8
        %s249 = scalar_lea.vmem %s0, %s248
        %v250 = vld [vmem:[%s249] sm:$0xff]
        %v251 = vld [vmem:[%s249 + $0x8] sm:$0xff]
        %v252 = vld [vmem:[%s249 + $0x10] sm:$0xff]
        %v253 = vld [vmem:[%s249 + $0x18] sm:$0xff]
        %v254 = vld [vmem:[%s249 + $0x20] sm:$0xff]
        %v255 = vld [vmem:[%s249 + $0x28] sm:$0xff]
        %v256 = vld [vmem:[%s249 + $0x30] sm:$0xff]
        %v257 = vld [vmem:[%s249 + $0x38] sm:$0xff]
        %v258 = vld [vmem:[%s249 + $0x40] sm:$0xff]
        %v259 = vld [vmem:[%s249 + $0x48] sm:$0xff]
        %v260 = vld [vmem:[%s249 + $0x50] sm:$0xff]
        %v261 = vld [vmem:[%s249 + $0x58] sm:$0xff]
        %v262 = vld [vmem:[%s249 + $0x60] sm:$0xff]
        %v263 = vld [vmem:[%s249 + $0x68] sm:$0xff]
        %v264 = vld [vmem:[%s249 + $0x70] sm:$0xff]
        %v265 = vld [vmem:[%s249 + $0x78] sm:$0xff]
        %v266 = vld [vmem:[%s249 + $0x80] sm:$0xff]
        %v267 = vld [vmem:[%s249 + $0x88] sm:$0xff]
        %v268 = vld [vmem:[%s249 + $0x90] sm:$0xff]
        %v269 = vld [vmem:[%s249 + $0x98] sm:$0xff]
        %v270 = vld [vmem:[%s1] sm:$0xff]
        %v271 = vld [vmem:[%s1 + $0x8] sm:$0xff]
        %v272 = vld [vmem:[%s1 + $0x10] sm:$0xff]
        %v273 = vld [vmem:[%s1 + $0x18] sm:$0xff]
        %v274 = vld [vmem:[%s1 + $0x20] sm:$0xff]
        %v275 = vld [vmem:[%s1 + $0x28] sm:$0xff]
        %v276 = vld [vmem:[%s1 + $0x30] sm:$0xff]
        %v277 = vld [vmem:[%s1 + $0x38] sm:$0xff]
        %v278 = vld [vmem:[%s1 + $0x40] sm:$0xff]
        %v279 = vld [vmem:[%s1 + $0x48] sm:$0xff]
        %v280 = vld [vmem:[%s1 + $0x50] sm:$0xff]
        %v281 = vld [vmem:[%s1 + $0x58] sm:$0xff]
        %v282 = vld [vmem:[%s1 + $0x60] sm:$0xff]
        %v283 = vld [vmem:[%s1 + $0x68] sm:$0xff]
        %v284 = vld [vmem:[%s1 + $0x70] sm:$0xff]
        %v285 = vld [vmem:[%s1 + $0x78] sm:$0xff]
        %286 = vmatprep.subr.mxu0 0.0
        %287 = vmatpush1.msra.mxu0 %v270
        %288 = vmatprep.subr.mxu0 0.0
        %289 = vmatpush1.msra.mxu0 %v271
        %290 = vmatprep.subr.mxu0 0.0
        %291 = vmatpush1.msra.mxu0 %v272
        %292 = vmatprep.subr.mxu0 0.0
        %293 = vmatpush1.msra.mxu0 %v273
        %294 = vmatprep.subr.mxu0 0.0
        %295 = vmatpush1.msra.mxu0 %v274
        %296 = vmatprep.subr.mxu0 0.0
        %297 = vmatpush1.msra.mxu0 %v275
        %298 = vmatprep.subr.mxu0 0.0
        %299 = vmatpush1.msra.mxu0 %v276
        %300 = vmatprep.subr.mxu0 0.0
        %301 = vmatpush1.msra.mxu0 %v277
        %302 = vmatprep.subr.mxu0 0.0
        %303 = vmatpush1.msra.mxu0 %v278
        %304 = vmatprep.subr.mxu0 0.0
        %305 = vmatpush1.msra.mxu0 %v279
        %306 = vmatprep.subr.mxu0 0.0
        %307 = vmatpush1.msra.mxu0 %v280
        %308 = vmatprep.subr.mxu0 0.0
        %309 = vmatpush1.msra.mxu0 %v281
        %310 = vmatprep.subr.mxu0 0.0
        %311 = vmatpush1.msra.mxu0 %v282
        %312 = vmatprep.subr.mxu0 0.0
        %313 = vmatpush1.msra.mxu0 %v283
        %314 = vmatprep.subr.mxu0 0.0
        %315 = vmatpush1.msra.mxu0 %v284
        %316 = vmatprep.subr.mxu0 0.0
        %317 = vmatpush1.msra.mxu0 %v285
        %318 = vmatprep.subr.mxu0 0.0
        %319 = vmatpush1.msra.mxu0 0.0
        %320 = vmatprep.subr.mxu0 0.0
        %321 = vmatpush1.msra.mxu0 0.0
        %322 = vmatprep.subr.mxu0 0.0
        %323 = vmatpush1.msra.mxu0 0.0
        %324 = vmatprep.subr.mxu0 0.0
        %325 = vmatpush1.msra.mxu0 0.0
        %326 = vmatprep.subr.mxu0 0.0
        %327 = vmatpush1.msra.mxu0 0.0
        %328 = vmatprep.subr.mxu0 0.0
        %329 = vmatpush1.msra.mxu0 0.0
        %330 = vmatprep.subr.mxu0 0.0
        %331 = vmatpush1.msra.mxu0 0.0
        %332 = vmatprep.subr.mxu0 0.0
        %333 = vmatpush1.msra.mxu0 0.0
        %334 = vmatprep.subr.mxu0 0.0
        %335 = vmatpush1.msra.mxu0 0.0
        %336 = vmatprep.subr.mxu0 0.0
        %337 = vmatpush1.msra.mxu0 0.0
        %338 = vmatprep.subr.mxu0 0.0
        %339 = vmatpush1.msra.mxu0 0.0
        %340 = vmatprep.subr.mxu0 0.0
        %341 = vmatpush1.msra.mxu0 0.0
        %342 = vmatprep.subr.mxu0 0.0
        %343 = vmatpush1.msra.mxu0 0.0
        %344 = vmatprep.subr.mxu0 0.0
        %345 = vmatpush1.msra.mxu0 0.0
        %346 = vmatprep.subr.mxu0 0.0
        %347 = vmatpush1.msra.mxu0 0.0
        %348 = vmatprep.subr.mxu0 0.0
        %349 = vmatpush1.msra.mxu0 0.0
        %350 = vmatprep.mubr.f32.mxu0 0.0
        %351 = vmatmul.mubr.f32.gmra.mrb[0].mxu0 %v250
        %v352 = vpop.f32.mrb[0].mxu0
        %v353 = vadd.f32 0.0, %v352
        %v354 = vpop.f32.mrb[0].mxu0
        %355 = vmatprep.mubr.f32.mxu0 0.0
        %356 = vmatmul.mubr.f32.gmra.mrb[0].mxu0 %v251
        %v357 = vpop.f32.mrb[0].mxu0
        %v358 = vadd.f32 0.0, %v357
        %v359 = vpop.f32.mrb[0].mxu0
        %360 = vmatprep.mubr.f32.mxu0 0.0
        %361 = vmatmul.mubr.f32.gmra.mrb[0].mxu0 %v252
        %v362 = vpop.f32.mrb[0].mxu0
        %v363 = vadd.f32 0.0, %v362
        %v364 = vpop.f32.mrb[0].mxu0
        %365 = vmatprep.mubr.f32.mxu0 0.0
        %366 = vmatmul.mubr.f32.gmra.mrb[0].mxu0 %v253
        %v367 = vpop.f32.mrb[0].mxu0
        %v368 = vadd.f32 0.0, %v367
        %v369 = vpop.f32.mrb[0].mxu0
        %370 = vmatprep.mubr.f32.mxu0 0.0
        %371 = vmatmul.mubr.f32.gmra.mrb[0].mxu0 %v254
        %v372 = vpop.f32.mrb[0].mxu0
        %v373 = vadd.f32 0.0, %v372
        %v374 = vpop.f32.mrb[0].mxu0
        %375 = vmatprep.mubr.f32.mxu0 0.0
        %376 = vmatmul.mubr.f32.gmra.mrb[0].mxu0 %v255
        %v377 = vpop.f32.mrb[0].mxu0
        %v378 = vadd.f32 0.0, %v377
        %v379 = vpop.f32.mrb[0].mxu0
        %380 = vmatprep.mubr.f32.mxu0 0.0
        %381 = vmatmul.mubr.f32.gmra.mrb[0].mxu0 %v256
        %v382 = vpop.f32.mrb[0].mxu0
        %v383 = vadd.f32 0.0, %v382
        %v384 = vpop.f32.mrb[0].mxu0
        %385 = vmatprep.mubr.f32.mxu0 0.0
        %386 = vmatmul.mubr.f32.gmra.mrb[0].mxu0 %v257
        %v387 = vpop.f32.mrb[0].mxu0
        %v388 = vadd.f32 0.0, %v387
        %v389 = vpop.f32.mrb[0].mxu0
        %390 = vmatprep.mubr.f32.mxu0 0.0
        %391 = vmatmul.mubr.f32.gmra.mrb[0].mxu0 %v258
        %v392 = vpop.f32.mrb[0].mxu0
        %v393 = vadd.f32 0.0, %v392
        %v394 = vpop.f32.mrb[0].mxu0
        %395 = vmatprep.mubr.f32.mxu0 0.0
        %396 = vmatmul.mubr.f32.gmra.mrb[0].mxu0 %v259
        %v397 = vpop.f32.mrb[0].mxu0
        %v398 = vadd.f32 0.0, %v397
        %v399 = vpop.f32.mrb[0].mxu0
        %400 = vmatprep.mubr.f32.mxu0 0.0
        %401 = vmatmul.mubr.f32.gmra.mrb[0].mxu0 %v260
        %v402 = vpop.f32.mrb[0].mxu0
        %v403 = vadd.f32 0.0, %v402
        %v404 = vpop.f32.mrb[0].mxu0
        %405 = vmatprep.mubr.f32.mxu0 0.0
        %406 = vmatmul.mubr.f32.gmra.mrb[0].mxu0 %v261
        %v407 = vpop.f32.mrb[0].mxu0
        %v408 = vadd.f32 0.0, %v407
        %v409 = vpop.f32.mrb[0].mxu0
        %410 = vmatprep.mubr.f32.mxu0 0.0
        %411 = vmatmul.mubr.f32.gmra.mrb[0].mxu0 %v262
        %v412 = vpop.f32.mrb[0].mxu0
        %v413 = vadd.f32 0.0, %v412
        %v414 = vpop.f32.mrb[0].mxu0
        %415 = vmatprep.mubr.f32.mxu0 0.0
        %416 = vmatmul.mubr.f32.gmra.mrb[0].mxu0 %v263
        %v417 = vpop.f32.mrb[0].mxu0
        %v418 = vadd.f32 0.0, %v417
        %v419 = vpop.f32.mrb[0].mxu0
        %420 = vmatprep.mubr.f32.mxu0 0.0
        %421 = vmatmul.mubr.f32.gmra.mrb[0].mxu0 %v264
        %v422 = vpop.f32.mrb[0].mxu0
        %v423 = vadd.f32 0.0, %v422
        %v424 = vpop.f32.mrb[0].mxu0
        %425 = vmatprep.mubr.f32.mxu0 0.0
        %426 = vmatmul.mubr.f32.gmra.mrb[0].mxu0 %v265
        %v427 = vpop.f32.mrb[0].mxu0
        %v428 = vadd.f32 0.0, %v427
        %v429 = vpop.f32.mrb[0].mxu0
        %430 = vmatprep.mubr.f32.mxu0 0.0
        %431 = vmatmul.mubr.f32.gmra.mrb[0].mxu0 %v266
        %v432 = vpop.f32.mrb[0].mxu0
        %v433 = vadd.f32 0.0, %v432
        %v434 = vpop.f32.mrb[0].mxu0
        %435 = vmatprep.mubr.f32.mxu0 0.0
        %436 = vmatmul.mubr.f32.gmra.mrb[0].mxu0 %v267
        %v437 = vpop.f32.mrb[0].mxu0
        %v438 = vadd.f32 0.0, %v437
        %v439 = vpop.f32.mrb[0].mxu0
        %440 = vmatprep.mubr.f32.mxu0 0.0
        %441 = vmatmul.mubr.f32.gmra.mrb[0].mxu0 %v268
        %v442 = vpop.f32.mrb[0].mxu0
        %v443 = vadd.f32 0.0, %v442
        %v444 = vpop.f32.mrb[0].mxu0
        %445 = vmatprep.mubr.f32.mxu0 0.0
        %446 = vmatmul.mubr.f32.gmra.mrb[0].mxu0 %v269
        %v447 = vpop.f32.mrb[0].mxu0
        %v448 = vadd.f32 0.0, %v447
        %v449 = vpop.f32.mrb[0].mxu0
        %450 = vdwg.mxu0
        %v451 = vmax.f32 %v353, %v378
        %v452 = vmax.f32 %v358, %v383
        %v453 = vmax.f32 %v363, %v388
        %v454 = vmax.f32 %v368, %v393
        %v455 = vmax.f32 %v373, %v398
        %v456 = vmax.f32 %v451, %v403
        %v457 = vmax.f32 %v452, %v408
        %v458 = vmax.f32 %v453, %v413
        %v459 = vmax.f32 %v454, %v418
        %v460 = vmax.f32 %v455, %v423
        %v461 = vmax.f32 %v456, %v428
        %v462 = vmax.f32 %v457, %v433
        %v463 = vmax.f32 %v458, %v438
        %v464 = vmax.f32 %v459, %v443
        %v465 = vmax.f32 %v460, %v448
        %v466 = vld [vmem:[%s2] sm:$0x1]
        %v468 = vlaneseq
        %v469 = vshrl.u32 %v468, 7
        %v470 = vsub.s32 0, %v469
        %v471 = vrot.slane %v466, %v470
        %v473 = vadd.f32 %v461, %v471
        %v474 = vadd.f32 %v462, %v471
        %v475 = vadd.f32 %v463, %v471
        %v476 = vadd.f32 %v464, %v471
        %v477 = vadd.f32 %v465, %v471
        %v478 = vmax.f32 %v473, 0.0
        %v479 = vmax.f32 %v474, 0.0
        %v480 = vmax.f32 %v475, 0.0
        %v481 = vmax.f32 %v476, 0.0
        %v482 = vmax.f32 %v477, 0.0
        %v483 = vld [vmem:[%s3] sm:$0xff]
        %v484 = vld [vmem:[%s3 + $0x8] sm:$0xff]
        %v485 = vld [vmem:[%s3 + $0x10] sm:$0xff]
        %v486 = vld [vmem:[%s3 + $0x18] sm:$0xff]
        %v487 = vld [vmem:[%s3 + $0x20] sm:$0xff]
        %v488 = vld [vmem:[%s3 + $0x28] sm:$0xff]
        %v489 = vld [vmem:[%s3 + $0x30] sm:$0xff]
        %v490 = vld [vmem:[%s3 + $0x38] sm:$0xff]
        %v491 = vld [vmem:[%s3 + $0x40] sm:$0xff]
        %v492 = vld [vmem:[%s3 + $0x48] sm:$0xff]
        %v493 = vld [vmem:[%s3 + $0x50] sm:$0xff]
        %v494 = vld [vmem:[%s3 + $0x58] sm:$0xff]
        %v495 = vld [vmem:[%s3 + $0x60] sm:$0xff]
        %v496 = vld [vmem:[%s3 + $0x68] sm:$0xff]
        %v497 = vld [vmem:[%s3 + $0x70] sm:$0xff]
        %v498 = vld [vmem:[%s3 + $0x78] sm:$0xff]
        %v499 = vld [vmem:[%s3 + $0x80] sm:$0xff]
        %v500 = vld [vmem:[%s3 + $0x88] sm:$0xff]
        %v501 = vld [vmem:[%s3 + $0x90] sm:$0xff]
        %v502 = vld [vmem:[%s3 + $0x98] sm:$0xff]
        %v503 = vld [vmem:[%s3 + $0xa0] sm:$0xff]
        %v504 = vld [vmem:[%s3 + $0xa8] sm:$0xff]
        %v505 = vld [vmem:[%s3 + $0xb0] sm:$0xff]
        %v506 = vld [vmem:[%s3 + $0xb8] sm:$0xff]
        %v507 = vld [vmem:[%s3 + $0xc0] sm:$0xff]
        %v508 = vld [vmem:[%s3 + $0xc8] sm:$0xff]
        %v509 = vld [vmem:[%s3 + $0xd0] sm:$0xff]
        %v510 = vld [vmem:[%s3 + $0xd8] sm:$0xff]
        %v511 = vld [vmem:[%s3 + $0xe0] sm:$0xff]
        %v512 = vld [vmem:[%s3 + $0xe8] sm:$0xff]
        %v513 = vld [vmem:[%s3 + $0xf0] sm:$0xff]
        %v514 = vld [vmem:[%s3 + $0xf8] sm:$0xff]
        %v515 = vld [vmem:[%s3 + $0x100] sm:$0xff]
        %v516 = vld [vmem:[%s3 + $0x108] sm:$0xff]
        %v517 = vld [vmem:[%s3 + $0x110] sm:$0xff]
        %v518 = vld [vmem:[%s3 + $0x118] sm:$0xff]
        %vm519 = vcmask 326656
        %v521 = vsel %vm519, %v483, 0
        %v524 = vsel %vm519, %v484, 0
        %v527 = vsel %vm519, %v485, 0
        %v530 = vsel %vm519, %v486, 0
        %v533 = vsel %vm519, %v487, 0
        %v536 = vsel %vm519, %v488, 0
        %v539 = vsel %vm519, %v489, 0
        %v542 = vsel %vm519, %v490, 0
        %v545 = vsel %vm519, %v491, 0
        %v548 = vsel %vm519, %v492, 0
        %v551 = vsel %vm519, %v493, 0
        %v554 = vsel %vm519, %v494, 0
        %v557 = vsel %vm519, %v495, 0
        %v560 = vsel %vm519, %v496, 0
        %v563 = vsel %vm519, %v497, 0
        %v566 = vsel %vm519, %v498, 0
        %v569 = vsel %vm519, %v499, 0
        %v572 = vsel %vm519, %v500, 0
        %v575 = vsel %vm519, %v501, 0
        %v578 = vsel %vm519, %v502, 0
        %v581 = vsel %vm519, %v503, 0
        %v584 = vsel %vm519, %v504, 0
        %v587 = vsel %vm519, %v505, 0
        %v590 = vsel %vm519, %v506, 0
        %v593 = vsel %vm519, %v507, 0
        %v596 = vsel %vm519, %v508, 0
        %v599 = vsel %vm519, %v509, 0
        %v602 = vsel %vm519, %v510, 0
        %v605 = vsel %vm519, %v511, 0
        %v608 = vsel %vm519, %v512, 0
        %v611 = vsel %vm519, %v513, 0
        %v614 = vsel %vm519, %v514, 0
        %v617 = vsel %vm519, %v515, 0
        %v620 = vsel %vm519, %v516, 0
        %v623 = vsel %vm519, %v517, 0
        %v626 = vsel %vm519, %v518, 0
        %628 = vmatprep.subr.mxu0 0.0
        %629 = vmatpush1.msra.mxu0 %v478
        %630 = vmatprep.subr.mxu0 0.0
        %631 = vmatpush1.msra.mxu0 %v479
        %632 = vmatprep.subr.mxu0 0.0
        %633 = vmatpush1.msra.mxu0 %v480
        %634 = vmatprep.subr.mxu0 0.0
        %635 = vmatpush1.msra.mxu0 %v481
        %636 = vmatprep.subr.mxu0 0.0
        %637 = vmatpush1.msra.mxu0 %v482
        %638 = vmatprep.subr.mxu0 0.0
        %639 = vmatpush1.msra.mxu0 0.0
        %640 = vmatprep.subr.mxu0 0.0
        %641 = vmatpush1.msra.mxu0 0.0
        %642 = vmatprep.subr.mxu0 0.0
        %643 = vmatpush1.msra.mxu0 0.0
        %644 = vmatprep.subr.mxu0 0.0
        %645 = vmatpush1.msra.mxu0 0.0
        %646 = vmatprep.subr.mxu0 0.0
        %647 = vmatpush1.msra.mxu0 0.0
        %648 = vmatprep.subr.mxu0 0.0
        %649 = vmatpush1.msra.mxu0 0.0
        %650 = vmatprep.subr.mxu0 0.0
        %651 = vmatpush1.msra.mxu0 0.0
        %652 = vmatprep.subr.mxu0 0.0
        %653 = vmatpush1.msra.mxu0 0.0
        %654 = vmatprep.subr.mxu0 0.0
        %655 = vmatpush1.msra.mxu0 0.0
        %656 = vmatprep.subr.mxu0 0.0
        %657 = vmatpush1.msra.mxu0 0.0
        %658 = vmatprep.subr.mxu0 0.0
        %659 = vmatpush1.msra.mxu0 0.0
        %660 = vmatprep.subr.mxu0 0.0
        %661 = vmatpush1.msra.mxu0 0.0
        %662 = vmatprep.subr.mxu0 0.0
        %663 = vmatpush1.msra.mxu0 0.0
        %664 = vmatprep.subr.mxu0 0.0
        %665 = vmatpush1.msra.mxu0 0.0
        %666 = vmatprep.subr.mxu0 0.0
        %667 = vmatpush1.msra.mxu0 0.0
        %668 = vmatprep.subr.mxu0 0.0
        %669 = vmatpush1.msra.mxu0 0.0
        %670 = vmatprep.subr.mxu0 0.0
        %671 = vmatpush1.msra.mxu0 0.0
        %672 = vmatprep.subr.mxu0 0.0
        %673 = vmatpush1.msra.mxu0 0.0
        %674 = vmatprep.subr.mxu0 0.0
        %675 = vmatpush1.msra.mxu0 0.0
        %676 = vmatprep.subr.mxu0 0.0
        %677 = vmatpush1.msra.mxu0 0.0
        %678 = vmatprep.subr.mxu0 0.0
        %679 = vmatpush1.msra.mxu0 0.0
        %680 = vmatprep.subr.mxu0 0.0
        %681 = vmatpush1.msra.mxu0 0.0
        %682 = vmatprep.subr.mxu0 0.0
        %683 = vmatpush1.msra.mxu0 0.0
        %684 = vmatprep.subr.mxu0 0.0
        %685 = vmatpush1.msra.mxu0 0.0
        %686 = vmatprep.subr.mxu0 0.0
        %687 = vmatpush1.msra.mxu0 0.0
        %688 = vmatprep.subr.mxu0 0.0
        %689 = vmatpush1.msra.mxu0 0.0
        %690 = vmatprep.subr.mxu0 0.0
        %691 = vmatpush1.msra.mxu0 0.0
        %692 = vmatprep.mubr.f32.mxu0 0.0
        %693 = vmatmul.mubr.f32.gmra.mrb[0].mxu0 %v521
        %v694 = vpop.f32.mrb[0].mxu0
        %v695 = vadd.f32 0.0, %v694
        %v696 = vpop.f32.mrb[0].mxu0
        %697 = vmatprep.mubr.f32.mxu0 0.0
        %698 = vmatmul.mubr.f32.gmra.mrb[0].mxu0 %v524
        %v699 = vpop.f32.mrb[0].mxu0
        %v700 = vadd.f32 0.0, %v699
        %v701 = vpop.f32.mrb[0].mxu0
        %702 = vmatprep.mubr.f32.mxu0 0.0
        %703 = vmatmul.mubr.f32.gmra.mrb[0].mxu0 %v527
        %v704 = vpop.f32.mrb[0].mxu0
        %v705 = vadd.f32 0.0, %v704
        %v706 = vpop.f32.mrb[0].mxu0
        %707 = vmatprep.mubr.f32.mxu0 0.0
        %708 = vmatmul.mubr.f32.gmra.mrb[0].mxu0 %v530
        %v709 = vpop.f32.mrb[0].mxu0
        %v710 = vadd.f32 0.0, %v709
        %v711 = vpop.f32.mrb[0].mxu0
        %712 = vmatprep.mubr.f32.mxu0 0.0
        %713 = vmatmul.mubr.f32.gmra.mrb[0].mxu0 %v533
        %v714 = vpop.f32.mrb[0].mxu0
        %v715 = vadd.f32 0.0, %v714
        %v716 = vpop.f32.mrb[0].mxu0
        %717 = vmatprep.mubr.f32.mxu0 0.0
        %718 = vmatmul.mubr.f32.gmra.mrb[0].mxu0 %v536
        %v719 = vpop.f32.mrb[0].mxu0
        %v720 = vadd.f32 0.0, %v719
        %v721 = vpop.f32.mrb[0].mxu0
        %722 = vmatprep.mubr.f32.mxu0 0.0
        %723 = vmatmul.mubr.f32.gmra.mrb[0].mxu0 %v539
        %v724 = vpop.f32.mrb[0].mxu0
        %v725 = vadd.f32 0.0, %v724
        %v726 = vpop.f32.mrb[0].mxu0
        %727 = vmatprep.mubr.f32.mxu0 0.0
        %728 = vmatmul.mubr.f32.gmra.mrb[0].mxu0 %v542
        %v729 = vpop.f32.mrb[0].mxu0
        %v730 = vadd.f32 0.0, %v729
        %v731 = vpop.f32.mrb[0].mxu0
        %732 = vmatprep.mubr.f32.mxu0 0.0
        %733 = vmatmul.mubr.f32.gmra.mrb[0].mxu0 %v545
        %v734 = vpop.f32.mrb[0].mxu0
        %v735 = vadd.f32 0.0, %v734
        %v736 = vpop.f32.mrb[0].mxu0
        %737 = vmatprep.mubr.f32.mxu0 0.0
        %738 = vmatmul.mubr.f32.gmra.mrb[0].mxu0 %v548
        %v739 = vpop.f32.mrb[0].mxu0
        %v740 = vadd.f32 0.0, %v739
        %v741 = vpop.f32.mrb[0].mxu0
        %742 = vmatprep.mubr.f32.mxu0 0.0
        %743 = vmatmul.mubr.f32.gmra.mrb[0].mxu0 %v551
        %v744 = vpop.f32.mrb[0].mxu0
        %v745 = vadd.f32 0.0, %v744
        %v746 = vpop.f32.mrb[0].mxu0
        %747 = vmatprep.mubr.f32.mxu0 0.0
        %748 = vmatmul.mubr.f32.gmra.mrb[0].mxu0 %v554
        %v749 = vpop.f32.mrb[0].mxu0
        %v750 = vadd.f32 0.0, %v749
        %v751 = vpop.f32.mrb[0].mxu0
        %752 = vmatprep.mubr.f32.mxu0 0.0
        %753 = vmatmul.mubr.f32.gmra.mrb[0].mxu0 %v557
        %v754 = vpop.f32.mrb[0].mxu0
        %v755 = vadd.f32 0.0, %v754
        %v756 = vpop.f32.mrb[0].mxu0
        %757 = vmatprep.mubr.f32.mxu0 0.0
        %758 = vmatmul.mubr.f32.gmra.mrb[0].mxu0 %v560
        %v759 = vpop.f32.mrb[0].mxu0
        %v760 = vadd.f32 0.0, %v759
        %v761 = vpop.f32.mrb[0].mxu0
        %762 = vmatprep.mubr.f32.mxu0 0.0
        %763 = vmatmul.mubr.f32.gmra.mrb[0].mxu0 %v563
        %v764 = vpop.f32.mrb[0].mxu0
        %v765 = vadd.f32 0.0, %v764
        %v766 = vpop.f32.mrb[0].mxu0
        %767 = vmatprep.mubr.f32.mxu0 0.0
        %768 = vmatmul.mubr.f32.gmra.mrb[0].mxu0 %v566
        %v769 = vpop.f32.mrb[0].mxu0
        %v770 = vadd.f32 0.0, %v769
        %v771 = vpop.f32.mrb[0].mxu0
        %772 = vmatprep.mubr.f32.mxu0 0.0
        %773 = vmatmul.mubr.f32.gmra.mrb[0].mxu0 %v569
        %v774 = vpop.f32.mrb[0].mxu0
        %v775 = vadd.f32 0.0, %v774
        %v776 = vpop.f32.mrb[0].mxu0
        %777 = vmatprep.mubr.f32.mxu0 0.0
        %778 = vmatmul.mubr.f32.gmra.mrb[0].mxu0 %v572
        %v779 = vpop.f32.mrb[0].mxu0
        %v780 = vadd.f32 0.0, %v779
        %v781 = vpop.f32.mrb[0].mxu0
        %782 = vmatprep.mubr.f32.mxu0 0.0
        %783 = vmatmul.mubr.f32.gmra.mrb[0].mxu0 %v575
        %v784 = vpop.f32.mrb[0].mxu0
        %v785 = vadd.f32 0.0, %v784
        %v786 = vpop.f32.mrb[0].mxu0
        %787 = vmatprep.mubr.f32.mxu0 0.0
        %788 = vmatmul.mubr.f32.gmra.mrb[0].mxu0 %v578
        %v789 = vpop.f32.mrb[0].mxu0
        %v790 = vadd.f32 0.0, %v789
        %v791 = vpop.f32.mrb[0].mxu0
        %792 = vmatprep.mubr.f32.mxu0 0.0
        %793 = vmatmul.mubr.f32.gmra.mrb[0].mxu0 %v581
        %v794 = vpop.f32.mrb[0].mxu0
        %v795 = vadd.f32 0.0, %v794
        %v796 = vpop.f32.mrb[0].mxu0
        %797 = vmatprep.mubr.f32.mxu0 0.0
        %798 = vmatmul.mubr.f32.gmra.mrb[0].mxu0 %v584
        %v799 = vpop.f32.mrb[0].mxu0
        %v800 = vadd.f32 0.0, %v799
        %v801 = vpop.f32.mrb[0].mxu0
        %802 = vmatprep.mubr.f32.mxu0 0.0
        %803 = vmatmul.mubr.f32.gmra.mrb[0].mxu0 %v587
        %v804 = vpop.f32.mrb[0].mxu0
        %v805 = vadd.f32 0.0, %v804
        %v806 = vpop.f32.mrb[0].mxu0
        %807 = vmatprep.mubr.f32.mxu0 0.0
        %808 = vmatmul.mubr.f32.gmra.mrb[0].mxu0 %v590
        %v809 = vpop.f32.mrb[0].mxu0
        %v810 = vadd.f32 0.0, %v809
        %v811 = vpop.f32.mrb[0].mxu0
        %812 = vmatprep.mubr.f32.mxu0 0.0
        %813 = vmatmul.mubr.f32.gmra.mrb[0].mxu0 %v593
        %v814 = vpop.f32.mrb[0].mxu0
        %v815 = vadd.f32 0.0, %v814
        %v816 = vpop.f32.mrb[0].mxu0
        %817 = vmatprep.mubr.f32.mxu0 0.0
        %818 = vmatmul.mubr.f32.gmra.mrb[0].mxu0 %v596
        %v819 = vpop.f32.mrb[0].mxu0
        %v820 = vadd.f32 0.0, %v819
        %v821 = vpop.f32.mrb[0].mxu0
        %822 = vmatprep.mubr.f32.mxu0 0.0
        %823 = vmatmul.mubr.f32.gmra.mrb[0].mxu0 %v599
        %v824 = vpop.f32.mrb[0].mxu0
        %v825 = vadd.f32 0.0, %v824
        %v826 = vpop.f32.mrb[0].mxu0
        %827 = vmatprep.mubr.f32.mxu0 0.0
        %828 = vmatmul.mubr.f32.gmra.mrb[0].mxu0 %v602
        %v829 = vpop.f32.mrb[0].mxu0
        %v830 = vadd.f32 0.0, %v829
        %v831 = vpop.f32.mrb[0].mxu0
        %832 = vmatprep.mubr.f32.mxu0 0.0
        %833 = vmatmul.mubr.f32.gmra.mrb[0].mxu0 %v605
        %v834 = vpop.f32.mrb[0].mxu0
        %v835 = vadd.f32 0.0, %v834
        %v836 = vpop.f32.mrb[0].mxu0
        %837 = vmatprep.mubr.f32.mxu0 0.0
        %838 = vmatmul.mubr.f32.gmra.mrb[0].mxu0 %v608
        %v839 = vpop.f32.mrb[0].mxu0
        %v840 = vadd.f32 0.0, %v839
        %v841 = vpop.f32.mrb[0].mxu0
        %842 = vmatprep.mubr.f32.mxu0 0.0
        %843 = vmatmul.mubr.f32.gmra.mrb[0].mxu0 %v611
        %v844 = vpop.f32.mrb[0].mxu0
        %v845 = vadd.f32 0.0, %v844
        %v846 = vpop.f32.mrb[0].mxu0
        %847 = vmatprep.mubr.f32.mxu0 0.0
        %848 = vmatmul.mubr.f32.gmra.mrb[0].mxu0 %v614
        %v849 = vpop.f32.mrb[0].mxu0
        %v850 = vadd.f32 0.0, %v849
        %v851 = vpop.f32.mrb[0].mxu0
        %852 = vmatprep.mubr.f32.mxu0 0.0
        %853 = vmatmul.mubr.f32.gmra.mrb[0].mxu0 %v617
        %v854 = vpop.f32.mrb[0].mxu0
        %v855 = vadd.f32 0.0, %v854
        %v856 = vpop.f32.mrb[0].mxu0
        %857 = vmatprep.mubr.f32.mxu0 0.0
        %858 = vmatmul.mubr.f32.gmra.mrb[0].mxu0 %v620
        %v859 = vpop.f32.mrb[0].mxu0
        %v860 = vadd.f32 0.0, %v859
        %v861 = vpop.f32.mrb[0].mxu0
        %862 = vmatprep.mubr.f32.mxu0 0.0
        %863 = vmatmul.mubr.f32.gmra.mrb[0].mxu0 %v623
        %v864 = vpop.f32.mrb[0].mxu0
        %v865 = vadd.f32 0.0, %v864
        %v866 = vpop.f32.mrb[0].mxu0
        %867 = vmatprep.mubr.f32.mxu0 0.0
        %868 = vmatmul.mubr.f32.gmra.mrb[0].mxu0 %v626
        %v869 = vpop.f32.mrb[0].mxu0
        %v870 = vadd.f32 0.0, %v869
        %v871 = vpop.f32.mrb[0].mxu0
        %872 = vdwg.mxu0
        %v873 = vld [vmem:[%s4] sm:$0xff]
        %v874 = vld [vmem:[%s4 + $0x8] sm:$0xff]
        %v875 = vld [vmem:[%s4 + $0x10] sm:$0xff]
        %s876 = scalar_lea.vmem %s4, 24
        %v877 = vld [vmem:[%s876] sm:$0xff]
        %v878 = vld [vmem:[%s876 + $0x8] sm:$0xff]
        %v879 = vld [vmem:[%s876 + $0x10] sm:$0xff]
        %vm880 = vcmask 195584
        %v882 = vsel %vm880, %v715, 0
        %v885 = vsel %vm880, %v720, 0
        %v888 = vsel %vm880, %v725, 0
        %v891 = vsel %vm880, %v730, 0
        %893 = vmatprep.subr.mxu0 0.0
        %894 = vmatpush1.msra.mxu0 %v877
        %895 = vmatprep.subr.mxu0 0.0
        %896 = vmatpush1.msra.mxu0 %v878
        %897 = vmatprep.subr.mxu0 0.0
        %898 = vmatpush1.msra.mxu0 %v879
        %899 = vmatprep.subr.mxu0 0.0
        %900 = vmatpush1.msra.mxu0 0.0
        %901 = vmatprep.subr.mxu0 0.0
        %902 = vmatpush1.msra.mxu0 0.0
        %903 = vmatprep.subr.mxu0 0.0
        %904 = vmatpush1.msra.mxu0 0.0
        %905 = vmatprep.subr.mxu0 0.0
        %906 = vmatpush1.msra.mxu0 0.0
        %907 = vmatprep.subr.mxu0 0.0
        %908 = vmatpush1.msra.mxu0 0.0
        %909 = vmatprep.subr.mxu0 0.0
        %910 = vmatpush1.msra.mxu0 0.0
        %911 = vmatprep.subr.mxu0 0.0
        %912 = vmatpush1.msra.mxu0 0.0
        %913 = vmatprep.subr.mxu0 0.0
        %914 = vmatpush1.msra.mxu0 0.0
        %915 = vmatprep.subr.mxu0 0.0
        %916 = vmatpush1.msra.mxu0 0.0
        %917 = vmatprep.subr.mxu0 0.0
        %918 = vmatpush1.msra.mxu0 0.0
        %919 = vmatprep.subr.mxu0 0.0
        %920 = vmatpush1.msra.mxu0 0.0
        %921 = vmatprep.subr.mxu0 0.0
        %922 = vmatpush1.msra.mxu0 0.0
        %923 = vmatprep.subr.mxu0 0.0
        %924 = vmatpush1.msra.mxu0 0.0
        %925 = vmatprep.subr.mxu0 0.0
        %926 = vmatpush1.msra.mxu0 0.0
        %927 = vmatprep.subr.mxu0 0.0
        %928 = vmatpush1.msra.mxu0 0.0
        %929 = vmatprep.subr.mxu0 0.0
        %930 = vmatpush1.msra.mxu0 0.0
        %931 = vmatprep.subr.mxu0 0.0
        %932 = vmatpush1.msra.mxu0 0.0
        %933 = vmatprep.subr.mxu0 0.0
        %934 = vmatpush1.msra.mxu0 0.0
        %935 = vmatprep.subr.mxu0 0.0
        %936 = vmatpush1.msra.mxu0 0.0
        %937 = vmatprep.subr.mxu0 0.0
        %938 = vmatpush1.msra.mxu0 0.0
        %939 = vmatprep.subr.mxu0 0.0
        %940 = vmatpush1.msra.mxu0 0.0
        %941 = vmatprep.subr.mxu0 0.0
        %942 = vmatpush1.msra.mxu0 0.0
        %943 = vmatprep.subr.mxu0 0.0
        %944 = vmatpush1.msra.mxu0 0.0
        %945 = vmatprep.subr.mxu0 0.0
        %946 = vmatpush1.msra.mxu0 0.0
        %947 = vmatprep.subr.mxu0 0.0
        %948 = vmatpush1.msra.mxu0 0.0
        %949 = vmatprep.subr.mxu0 0.0
        %950 = vmatpush1.msra.mxu0 0.0
        %951 = vmatprep.subr.mxu0 0.0
        %952 = vmatpush1.msra.mxu0 0.0
        %953 = vmatprep.subr.mxu0 0.0
        %954 = vmatpush1.msra.mxu0 0.0
        %955 = vmatprep.subr.mxu0 0.0
        %956 = vmatpush1.msra.mxu0 0.0
        %957 = vmatprep.mubr.f32.mxu0 0.0
        %958 = vmatmul.mubr.f32.gmra.mrb[0].mxu0 %v882
        %v959 = vpop.f32.mrb[0].mxu0
        %v960 = vadd.f32 0.0, %v959
        %v961 = vpop.f32.mrb[0].mxu0
        %962 = vmatprep.mubr.f32.mxu0 0.0
        %963 = vmatmul.mubr.f32.gmra.mrb[0].mxu0 %v885
        %v964 = vpop.f32.mrb[0].mxu0
        %v965 = vadd.f32 0.0, %v964
        %v966 = vpop.f32.mrb[0].mxu0
        %967 = vmatprep.mubr.f32.mxu0 0.0
        %968 = vmatmul.mubr.f32.gmra.mrb[0].mxu0 %v888
        %v969 = vpop.f32.mrb[0].mxu0
        %v970 = vadd.f32 0.0, %v969
        %v971 = vpop.f32.mrb[0].mxu0
        %972 = vmatprep.mubr.f32.mxu0 0.0
        %973 = vmatmul.mubr.f32.gmra.mrb[0].mxu0 %v891
        %v974 = vpop.f32.mrb[0].mxu0
        %v975 = vadd.f32 0.0, %v974
        %v976 = vpop.f32.mrb[0].mxu0
        %977 = vdwg.mxu0
        %v979 = vsel %vm880, %v695, 0
        %v982 = vsel %vm880, %v700, 0
        %v985 = vsel %vm880, %v705, 0
        %v988 = vsel %vm880, %v710, 0
        %990 = vmatprep.subr.mxu0 0.0
        %991 = vmatpush1.msra.mxu0 %v873
        %992 = vmatprep.subr.mxu0 0.0
        %993 = vmatpush1.msra.mxu0 %v874
        %994 = vmatprep.subr.mxu0 0.0
        %995 = vmatpush1.msra.mxu0 %v875
        %996 = vmatprep.subr.mxu0 0.0
        %997 = vmatpush1.msra.mxu0 0.0
        %998 = vmatprep.subr.mxu0 0.0
        %999 = vmatpush1.msra.mxu0 0.0
        %1000 = vmatprep.subr.mxu0 0.0
        %1001 = vmatpush1.msra.mxu0 0.0
        %1002 = vmatprep.subr.mxu0 0.0
        %1003 = vmatpush1.msra.mxu0 0.0
        %1004 = vmatprep.subr.mxu0 0.0
        %1005 = vmatpush1.msra.mxu0 0.0
        %1006 = vmatprep.subr.mxu0 0.0
        %1007 = vmatpush1.msra.mxu0 0.0
        %1008 = vmatprep.subr.mxu0 0.0
        %1009 = vmatpush1.msra.mxu0 0.0
        %1010 = vmatprep.subr.mxu0 0.0
        %1011 = vmatpush1.msra.mxu0 0.0
        %1012 = vmatprep.subr.mxu0 0.0
        %1013 = vmatpush1.msra.mxu0 0.0
        %1014 = vmatprep.subr.mxu0 0.0
        %1015 = vmatpush1.msra.mxu0 0.0
        %1016 = vmatprep.subr.mxu0 0.0
        %1017 = vmatpush1.msra.mxu0 0.0
        %1018 = vmatprep.subr.mxu0 0.0
        %1019 = vmatpush1.msra.mxu0 0.0
        %1020 = vmatprep.subr.mxu0 0.0
        %1021 = vmatpush1.msra.mxu0 0.0
        %1022 = vmatprep.subr.mxu0 0.0
        %1023 = vmatpush1.msra.mxu0 0.0
        %1024 = vmatprep.subr.mxu0 0.0
        %1025 = vmatpush1.msra.mxu0 0.0
        %1026 = vmatprep.subr.mxu0 0.0
        %1027 = vmatpush1.msra.mxu0 0.0
        %1028 = vmatprep.subr.mxu0 0.0
        %1029 = vmatpush1.msra.mxu0 0.0
        %1030 = vmatprep.subr.mxu0 0.0
        %1031 = vmatpush1.msra.mxu0 0.0
        %1032 = vmatprep.subr.mxu0 0.0
        %1033 = vmatpush1.msra.mxu0 0.0
        %1034 = vmatprep.subr.mxu0 0.0
        %1035 = vmatpush1.msra.mxu0 0.0
        %1036 = vmatprep.subr.mxu0 0.0
        %1037 = vmatpush1.msra.mxu0 0.0
        %1038 = vmatprep.subr.mxu0 0.0
        %1039 = vmatpush1.msra.mxu0 0.0
        %1040 = vmatprep.subr.mxu0 0.0
        %1041 = vmatpush1.msra.mxu0 0.0
        %1042 = vmatprep.subr.mxu0 0.0
        %1043 = vmatpush1.msra.mxu0 0.0
        %1044 = vmatprep.subr.mxu0 0.0
        %1045 = vmatpush1.msra.mxu0 0.0
        %1046 = vmatprep.subr.mxu0 0.0
        %1047 = vmatpush1.msra.mxu0 0.0
        %1048 = vmatprep.subr.mxu0 0.0
        %1049 = vmatpush1.msra.mxu0 0.0
        %1050 = vmatprep.subr.mxu0 0.0
        %1051 = vmatpush1.msra.mxu0 0.0
        %1052 = vmatprep.subr.mxu0 0.0
        %1053 = vmatpush1.msra.mxu0 0.0
        %1054 = vmatprep.mubr.f32.mxu0 0.0
        %1055 = vmatmul.mubr.f32.gmra.mrb[0].mxu0 %v979
        %v1056 = vpop.f32.mrb[0].mxu0
        %v1057 = vadd.f32 %v960, %v1056
        %v1058 = vpop.f32.mrb[0].mxu0
        %1059 = vmatprep.mubr.f32.mxu0 0.0
        %1060 = vmatmul.mubr.f32.gmra.mrb[0].mxu0 %v982
        %v1061 = vpop.f32.mrb[0].mxu0
        %v1062 = vadd.f32 %v965, %v1061
        %v1063 = vpop.f32.mrb[0].mxu0
        %1064 = vmatprep.mubr.f32.mxu0 0.0
        %1065 = vmatmul.mubr.f32.gmra.mrb[0].mxu0 %v985
        %v1066 = vpop.f32.mrb[0].mxu0
        %v1067 = vadd.f32 %v970, %v1066
        %v1068 = vpop.f32.mrb[0].mxu0
        %1069 = vmatprep.mubr.f32.mxu0 0.0
        %1070 = vmatmul.mubr.f32.gmra.mrb[0].mxu0 %v988
        %v1071 = vpop.f32.mrb[0].mxu0
        %v1072 = vadd.f32 %v975, %v1071
        %v1073 = vpop.f32.mrb[0].mxu0
        %1074 = vdwg.mxu0
        %s1075 = scalar_lea.vmem %s4, 48
        %v1076 = vld [vmem:[%s1075] sm:$0xff]
        %v1077 = vld [vmem:[%s1075 + $0x8] sm:$0xff]
        %v1078 = vld [vmem:[%s1075 + $0x10] sm:$0xff]
        %v1080 = vsel %vm880, %v735, 0
        %v1083 = vsel %vm880, %v740, 0
        %v1086 = vsel %vm880, %v745, 0
        %v1089 = vsel %vm880, %v750, 0
        %1091 = vmatprep.subr.mxu0 0.0
        %1092 = vmatpush1.msra.mxu0 %v1076
        %1093 = vmatprep.subr.mxu0 0.0
        %1094 = vmatpush1.msra.mxu0 %v1077
        %1095 = vmatprep.subr.mxu0 0.0
        %1096 = vmatpush1.msra.mxu0 %v1078
        %1097 = vmatprep.subr.mxu0 0.0
        %1098 = vmatpush1.msra.mxu0 0.0
        %1099 = vmatprep.subr.mxu0 0.0
        %1100 = vmatpush1.msra.mxu0 0.0
        %1101 = vmatprep.subr.mxu0 0.0
        %1102 = vmatpush1.msra.mxu0 0.0
        %1103 = vmatprep.subr.mxu0 0.0
        %1104 = vmatpush1.msra.mxu0 0.0
        %1105 = vmatprep.subr.mxu0 0.0
        %1106 = vmatpush1.msra.mxu0 0.0
        %1107 = vmatprep.subr.mxu0 0.0
        %1108 = vmatpush1.msra.mxu0 0.0
        %1109 = vmatprep.subr.mxu0 0.0
        %1110 = vmatpush1.msra.mxu0 0.0
        %1111 = vmatprep.subr.mxu0 0.0
        %1112 = vmatpush1.msra.mxu0 0.0
        %1113 = vmatprep.subr.mxu0 0.0
        %1114 = vmatpush1.msra.mxu0 0.0
        %1115 = vmatprep.subr.mxu0 0.0
        %1116 = vmatpush1.msra.mxu0 0.0
        %1117 = vmatprep.subr.mxu0 0.0
        %1118 = vmatpush1.msra.mxu0 0.0
        %1119 = vmatprep.subr.mxu0 0.0
        %1120 = vmatpush1.msra.mxu0 0.0
        %1121 = vmatprep.subr.mxu0 0.0
        %1122 = vmatpush1.msra.mxu0 0.0
        %1123 = vmatprep.subr.mxu0 0.0
        %1124 = vmatpush1.msra.mxu0 0.0
        %1125 = vmatprep.subr.mxu0 0.0
        %1126 = vmatpush1.msra.mxu0 0.0
        %1127 = vmatprep.subr.mxu0 0.0
        %1128 = vmatpush1.msra.mxu0 0.0
        %1129 = vmatprep.subr.mxu0 0.0
        %1130 = vmatpush1.msra.mxu0 0.0
        %1131 = vmatprep.subr.mxu0 0.0
        %1132 = vmatpush1.msra.mxu0 0.0
        %1133 = vmatprep.subr.mxu0 0.0
        %1134 = vmatpush1.msra.mxu0 0.0
        %1135 = vmatprep.subr.mxu0 0.0
        %1136 = vmatpush1.msra.mxu0 0.0
        %1137 = vmatprep.subr.mxu0 0.0
        %1138 = vmatpush1.msra.mxu0 0.0
        %1139 = vmatprep.subr.mxu0 0.0
        %1140 = vmatpush1.msra.mxu0 0.0
        %1141 = vmatprep.subr.mxu0 0.0
        %1142 = vmatpush1.msra.mxu0 0.0
        %1143 = vmatprep.subr.mxu0 0.0
        %1144 = vmatpush1.msra.mxu0 0.0
        %1145 = vmatprep.subr.mxu0 0.0
        %1146 = vmatpush1.msra.mxu0 0.0
        %1147 = vmatprep.subr.mxu0 0.0
        %1148 = vmatpush1.msra.mxu0 0.0
        %1149 = vmatprep.subr.mxu0 0.0
        %1150 = vmatpush1.msra.mxu0 0.0
        %1151 = vmatprep.subr.mxu0 0.0
        %1152 = vmatpush1.msra.mxu0 0.0
        %1153 = vmatprep.subr.mxu0 0.0
        %1154 = vmatpush1.msra.mxu0 0.0
        %1155 = vmatprep.mubr.f32.mxu0 0.0
        %1156 = vmatmul.mubr.f32.gmra.mrb[0].mxu0 %v1080
        %v1157 = vpop.f32.mrb[0].mxu0
        %v1158 = vadd.f32 0.0, %v1157
        %v1159 = vpop.f32.mrb[0].mxu0
        %1160 = vmatprep.mubr.f32.mxu0 0.0
        %1161 = vmatmul.mubr.f32.gmra.mrb[0].mxu0 %v1083
        %v1162 = vpop.f32.mrb[0].mxu0
        %v1163 = vadd.f32 0.0, %v1162
        %v1164 = vpop.f32.mrb[0].mxu0
        %1165 = vmatprep.mubr.f32.mxu0 0.0
        %1166 = vmatmul.mubr.f32.gmra.mrb[0].mxu0 %v1086
        %v1167 = vpop.f32.mrb[0].mxu0
        %v1168 = vadd.f32 0.0, %v1167
        %v1169 = vpop.f32.mrb[0].mxu0
        %1170 = vmatprep.mubr.f32.mxu0 0.0
        %1171 = vmatmul.mubr.f32.gmra.mrb[0].mxu0 %v1089
        %v1172 = vpop.f32.mrb[0].mxu0
        %v1173 = vadd.f32 0.0, %v1172
        %v1174 = vpop.f32.mrb[0].mxu0
        %1175 = vdwg.mxu0
        %v1176 = vadd.f32 %v1057, %v1158
        %v1177 = vadd.f32 %v1062, %v1163
        %v1178 = vadd.f32 %v1067, %v1168
        %v1179 = vadd.f32 %v1072, %v1173
        %s1180 = scalar_lea.vmem %s4, 72
        %v1181 = vld [vmem:[%s1180] sm:$0xff]
        %v1182 = vld [vmem:[%s1180 + $0x8] sm:$0xff]
        %v1183 = vld [vmem:[%s1180 + $0x10] sm:$0xff]
        %v1185 = vsel %vm880, %v755, 0
        %v1188 = vsel %vm880, %v760, 0
        %v1191 = vsel %vm880, %v765, 0
        %v1194 = vsel %vm880, %v770, 0
        %1196 = vmatprep.subr.mxu0 0.0
        %1197 = vmatpush1.msra.mxu0 %v1181
        %1198 = vmatprep.subr.mxu0 0.0
        %1199 = vmatpush1.msra.mxu0 %v1182
        %1200 = vmatprep.subr.mxu0 0.0
        %1201 = vmatpush1.msra.mxu0 %v1183
        %1202 = vmatprep.subr.mxu0 0.0
        %1203 = vmatpush1.msra.mxu0 0.0
        %1204 = vmatprep.subr.mxu0 0.0
        %1205 = vmatpush1.msra.mxu0 0.0
        %1206 = vmatprep.subr.mxu0 0.0
        %1207 = vmatpush1.msra.mxu0 0.0
        %1208 = vmatprep.subr.mxu0 0.0
        %1209 = vmatpush1.msra.mxu0 0.0
        %1210 = vmatprep.subr.mxu0 0.0
        %1211 = vmatpush1.msra.mxu0 0.0
        %1212 = vmatprep.subr.mxu0 0.0
        %1213 = vmatpush1.msra.mxu0 0.0
        %1214 = vmatprep.subr.mxu0 0.0
        %1215 = vmatpush1.msra.mxu0 0.0
        %1216 = vmatprep.subr.mxu0 0.0
        %1217 = vmatpush1.msra.mxu0 0.0
        %1218 = vmatprep.subr.mxu0 0.0
        %1219 = vmatpush1.msra.mxu0 0.0
        %1220 = vmatprep.subr.mxu0 0.0
        %1221 = vmatpush1.msra.mxu0 0.0
        %1222 = vmatprep.subr.mxu0 0.0
        %1223 = vmatpush1.msra.mxu0 0.0
        %1224 = vmatprep.subr.mxu0 0.0
        %1225 = vmatpush1.msra.mxu0 0.0
        %1226 = vmatprep.subr.mxu0 0.0
        %1227 = vmatpush1.msra.mxu0 0.0
        %1228 = vmatprep.subr.mxu0 0.0
        %1229 = vmatpush1.msra.mxu0 0.0
        %1230 = vmatprep.subr.mxu0 0.0
        %1231 = vmatpush1.msra.mxu0 0.0
        %1232 = vmatprep.subr.mxu0 0.0
        %1233 = vmatpush1.msra.mxu0 0.0
        %1234 = vmatprep.subr.mxu0 0.0
        %1235 = vmatpush1.msra.mxu0 0.0
        %1236 = vmatprep.subr.mxu0 0.0
        %1237 = vmatpush1.msra.mxu0 0.0
        %1238 = vmatprep.subr.mxu0 0.0
        %1239 = vmatpush1.msra.mxu0 0.0
        %1240 = vmatprep.subr.mxu0 0.0
        %1241 = vmatpush1.msra.mxu0 0.0
        %1242 = vmatprep.subr.mxu0 0.0
        %1243 = vmatpush1.msra.mxu0 0.0
        %1244 = vmatprep.subr.mxu0 0.0
        %1245 = vmatpush1.msra.mxu0 0.0
        %1246 = vmatprep.subr.mxu0 0.0
        %1247 = vmatpush1.msra.mxu0 0.0
        %1248 = vmatprep.subr.mxu0 0.0
        %1249 = vmatpush1.msra.mxu0 0.0
        %1250 = vmatprep.subr.mxu0 0.0
        %1251 = vmatpush1.msra.mxu0 0.0
        %1252 = vmatprep.subr.mxu0 0.0
        %1253 = vmatpush1.msra.mxu0 0.0
        %1254 = vmatprep.subr.mxu0 0.0
        %1255 = vmatpush1.msra.mxu0 0.0
        %1256 = vmatprep.subr.mxu0 0.0
        %1257 = vmatpush1.msra.mxu0 0.0
        %1258 = vmatprep.subr.mxu0 0.0
        %1259 = vmatpush1.msra.mxu0 0.0
        %1260 = vmatprep.mubr.f32.mxu0 0.0
        %1261 = vmatmul.mubr.f32.gmra.mrb[0].mxu0 %v1185
        %v1262 = vpop.f32.mrb[0].mxu0
        %v1263 = vadd.f32 0.0, %v1262
        %v1264 = vpop.f32.mrb[0].mxu0
        %1265 = vmatprep.mubr.f32.mxu0 0.0
        %1266 = vmatmul.mubr.f32.gmra.mrb[0].mxu0 %v1188
        %v1267 = vpop.f32.mrb[0].mxu0
        %v1268 = vadd.f32 0.0, %v1267
        %v1269 = vpop.f32.mrb[0].mxu0
        %1270 = vmatprep.mubr.f32.mxu0 0.0
        %1271 = vmatmul.mubr.f32.gmra.mrb[0].mxu0 %v1191
        %v1272 = vpop.f32.mrb[0].mxu0
        %v1273 = vadd.f32 0.0, %v1272
        %v1274 = vpop.f32.mrb[0].mxu0
        %1275 = vmatprep.mubr.f32.mxu0 0.0
        %1276 = vmatmul.mubr.f32.gmra.mrb[0].mxu0 %v1194
        %v1277 = vpop.f32.mrb[0].mxu0
        %v1278 = vadd.f32 0.0, %v1277
        %v1279 = vpop.f32.mrb[0].mxu0
        %1280 = vdwg.mxu0
        %v1281 = vadd.f32 %v1176, %v1263
        %v1282 = vadd.f32 %v1177, %v1268
        %v1283 = vadd.f32 %v1178, %v1273
        %v1284 = vadd.f32 %v1179, %v1278
        %s1285 = scalar_lea.vmem %s4, 96
        %v1286 = vld [vmem:[%s1285] sm:$0xff]
        %v1287 = vld [vmem:[%s1285 + $0x8] sm:$0xff]
        %v1288 = vld [vmem:[%s1285 + $0x10] sm:$0xff]
        %v1290 = vsel %vm880, %v775, 0
        %v1293 = vsel %vm880, %v780, 0
        %v1296 = vsel %vm880, %v785, 0
        %v1299 = vsel %vm880, %v790, 0
        %1301 = vmatprep.subr.mxu0 0.0
        %1302 = vmatpush1.msra.mxu0 %v1286
        %1303 = vmatprep.subr.mxu0 0.0
        %1304 = vmatpush1.msra.mxu0 %v1287
        %1305 = vmatprep.subr.mxu0 0.0
        %1306 = vmatpush1.msra.mxu0 %v1288
        %1307 = vmatprep.subr.mxu0 0.0
        %1308 = vmatpush1.msra.mxu0 0.0
        %1309 = vmatprep.subr.mxu0 0.0
        %1310 = vmatpush1.msra.mxu0 0.0
        %1311 = vmatprep.subr.mxu0 0.0
        %1312 = vmatpush1.msra.mxu0 0.0
        %1313 = vmatprep.subr.mxu0 0.0
        %1314 = vmatpush1.msra.mxu0 0.0
        %1315 = vmatprep.subr.mxu0 0.0
        %1316 = vmatpush1.msra.mxu0 0.0
        %1317 = vmatprep.subr.mxu0 0.0
        %1318 = vmatpush1.msra.mxu0 0.0
        %1319 = vmatprep.subr.mxu0 0.0
        %1320 = vmatpush1.msra.mxu0 0.0
        %1321 = vmatprep.subr.mxu0 0.0
        %1322 = vmatpush1.msra.mxu0 0.0
        %1323 = vmatprep.subr.mxu0 0.0
        %1324 = vmatpush1.msra.mxu0 0.0
        %1325 = vmatprep.subr.mxu0 0.0
        %1326 = vmatpush1.msra.mxu0 0.0
        %1327 = vmatprep.subr.mxu0 0.0
        %1328 = vmatpush1.msra.mxu0 0.0
        %1329 = vmatprep.subr.mxu0 0.0
        %1330 = vmatpush1.msra.mxu0 0.0
        %1331 = vmatprep.subr.mxu0 0.0
        %1332 = vmatpush1.msra.mxu0 0.0
        %1333 = vmatprep.subr.mxu0 0.0
        %1334 = vmatpush1.msra.mxu0 0.0
        %1335 = vmatprep.subr.mxu0 0.0
        %1336 = vmatpush1.msra.mxu0 0.0
        %1337 = vmatprep.subr.mxu0 0.0
        %1338 = vmatpush1.msra.mxu0 0.0
        %1339 = vmatprep.subr.mxu0 0.0
        %1340 = vmatpush1.msra.mxu0 0.0
        %1341 = vmatprep.subr.mxu0 0.0
        %1342 = vmatpush1.msra.mxu0 0.0
        %1343 = vmatprep.subr.mxu0 0.0
        %1344 = vmatpush1.msra.mxu0 0.0
        %1345 = vmatprep.subr.mxu0 0.0
        %1346 = vmatpush1.msra.mxu0 0.0
        %1347 = vmatprep.subr.mxu0 0.0
        %1348 = vmatpush1.msra.mxu0 0.0
        %1349 = vmatprep.subr.mxu0 0.0
        %1350 = vmatpush1.msra.mxu0 0.0
        %1351 = vmatprep.subr.mxu0 0.0
        %1352 = vmatpush1.msra.mxu0 0.0
        %1353 = vmatprep.subr.mxu0 0.0
        %1354 = vmatpush1.msra.mxu0 0.0
        %1355 = vmatprep.subr.mxu0 0.0
        %1356 = vmatpush1.msra.mxu0 0.0
        %1357 = vmatprep.subr.mxu0 0.0
        %1358 = vmatpush1.msra.mxu0 0.0
        %1359 = vmatprep.subr.mxu0 0.0
        %1360 = vmatpush1.msra.mxu0 0.0
        %1361 = vmatprep.subr.mxu0 0.0
        %1362 = vmatpush1.msra.mxu0 0.0
        %1363 = vmatprep.subr.mxu0 0.0
        %1364 = vmatpush1.msra.mxu0 0.0
        %1365 = vmatprep.mubr.f32.mxu0 0.0
        %1366 = vmatmul.mubr.f32.gmra.mrb[0].mxu0 %v1290
        %v1367 = vpop.f32.mrb[0].mxu0
        %v1368 = vadd.f32 0.0, %v1367
        %v1369 = vpop.f32.mrb[0].mxu0
        %1370 = vmatprep.mubr.f32.mxu0 0.0
        %1371 = vmatmul.mubr.f32.gmra.mrb[0].mxu0 %v1293
        %v1372 = vpop.f32.mrb[0].mxu0
        %v1373 = vadd.f32 0.0, %v1372
        %v1374 = vpop.f32.mrb[0].mxu0
        %1375 = vmatprep.mubr.f32.mxu0 0.0
        %1376 = vmatmul.mubr.f32.gmra.mrb[0].mxu0 %v1296
        %v1377 = vpop.f32.mrb[0].mxu0
        %v1378 = vadd.f32 0.0, %v1377
        %v1379 = vpop.f32.mrb[0].mxu0
        %1380 = vmatprep.mubr.f32.mxu0 0.0
        %1381 = vmatmul.mubr.f32.gmra.mrb[0].mxu0 %v1299
        %v1382 = vpop.f32.mrb[0].mxu0
        %v1383 = vadd.f32 0.0, %v1382
        %v1384 = vpop.f32.mrb[0].mxu0
        %1385 = vdwg.mxu0
        %v1386 = vadd.f32 %v1281, %v1368
        %v1387 = vadd.f32 %v1282, %v1373
        %v1388 = vadd.f32 %v1283, %v1378
        %v1389 = vadd.f32 %v1284, %v1383
        %s1390 = scalar_lea.vmem %s4, 120
        %v1391 = vld [vmem:[%s1390] sm:$0xff]
        %v1392 = vld [vmem:[%s1390 + $0x8] sm:$0xff]
        %v1393 = vld [vmem:[%s1390 + $0x10] sm:$0xff]
        %v1395 = vsel %vm880, %v795, 0
        %v1398 = vsel %vm880, %v800, 0
        %v1401 = vsel %vm880, %v805, 0
        %v1404 = vsel %vm880, %v810, 0
        %1406 = vmatprep.subr.mxu0 0.0
        %1407 = vmatpush1.msra.mxu0 %v1391
        %1408 = vmatprep.subr.mxu0 0.0
        %1409 = vmatpush1.msra.mxu0 %v1392
        %1410 = vmatprep.subr.mxu0 0.0
        %1411 = vmatpush1.msra.mxu0 %v1393
        %1412 = vmatprep.subr.mxu0 0.0
        %1413 = vmatpush1.msra.mxu0 0.0
        %1414 = vmatprep.subr.mxu0 0.0
        %1415 = vmatpush1.msra.mxu0 0.0
        %1416 = vmatprep.subr.mxu0 0.0
        %1417 = vmatpush1.msra.mxu0 0.0
        %1418 = vmatprep.subr.mxu0 0.0
        %1419 = vmatpush1.msra.mxu0 0.0
        %1420 = vmatprep.subr.mxu0 0.0
        %1421 = vmatpush1.msra.mxu0 0.0
        %1422 = vmatprep.subr.mxu0 0.0
        %1423 = vmatpush1.msra.mxu0 0.0
        %1424 = vmatprep.subr.mxu0 0.0
        %1425 = vmatpush1.msra.mxu0 0.0
        %1426 = vmatprep.subr.mxu0 0.0
        %1427 = vmatpush1.msra.mxu0 0.0
        %1428 = vmatprep.subr.mxu0 0.0
        %1429 = vmatpush1.msra.mxu0 0.0
        %1430 = vmatprep.subr.mxu0 0.0
        %1431 = vmatpush1.msra.mxu0 0.0
        %1432 = vmatprep.subr.mxu0 0.0
        %1433 = vmatpush1.msra.mxu0 0.0
        %1434 = vmatprep.subr.mxu0 0.0
        %1435 = vmatpush1.msra.mxu0 0.0
        %1436 = vmatprep.subr.mxu0 0.0
        %1437 = vmatpush1.msra.mxu0 0.0
        %1438 = vmatprep.subr.mxu0 0.0
        %1439 = vmatpush1.msra.mxu0 0.0
        %1440 = vmatprep.subr.mxu0 0.0
        %1441 = vmatpush1.msra.mxu0 0.0
        %1442 = vmatprep.subr.mxu0 0.0
        %1443 = vmatpush1.msra.mxu0 0.0
        %1444 = vmatprep.subr.mxu0 0.0
        %1445 = vmatpush1.msra.mxu0 0.0
        %1446 = vmatprep.subr.mxu0 0.0
        %1447 = vmatpush1.msra.mxu0 0.0
        %1448 = vmatprep.subr.mxu0 0.0
        %1449 = vmatpush1.msra.mxu0 0.0
        %1450 = vmatprep.subr.mxu0 0.0
        %1451 = vmatpush1.msra.mxu0 0.0
        %1452 = vmatprep.subr.mxu0 0.0
        %1453 = vmatpush1.msra.mxu0 0.0
        %1454 = vmatprep.subr.mxu0 0.0
        %1455 = vmatpush1.msra.mxu0 0.0
        %1456 = vmatprep.subr.mxu0 0.0
        %1457 = vmatpush1.msra.mxu0 0.0
        %1458 = vmatprep.subr.mxu0 0.0
        %1459 = vmatpush1.msra.mxu0 0.0
        %1460 = vmatprep.subr.mxu0 0.0
        %1461 = vmatpush1.msra.mxu0 0.0
        %1462 = vmatprep.subr.mxu0 0.0
        %1463 = vmatpush1.msra.mxu0 0.0
        %1464 = vmatprep.subr.mxu0 0.0
        %1465 = vmatpush1.msra.mxu0 0.0
        %1466 = vmatprep.subr.mxu0 0.0
        %1467 = vmatpush1.msra.mxu0 0.0
        %1468 = vmatprep.subr.mxu0 0.0
        %1469 = vmatpush1.msra.mxu0 0.0
        %1470 = vmatprep.mubr.f32.mxu0 0.0
        %1471 = vmatmul.mubr.f32.gmra.mrb[0].mxu0 %v1395
        %v1472 = vpop.f32.mrb[0].mxu0
        %v1473 = vadd.f32 0.0, %v1472
        %v1474 = vpop.f32.mrb[0].mxu0
        %1475 = vmatprep.mubr.f32.mxu0 0.0
        %1476 = vmatmul.mubr.f32.gmra.mrb[0].mxu0 %v1398
        %v1477 = vpop.f32.mrb[0].mxu0
        %v1478 = vadd.f32 0.0, %v1477
        %v1479 = vpop.f32.mrb[0].mxu0
        %1480 = vmatprep.mubr.f32.mxu0 0.0
        %1481 = vmatmul.mubr.f32.gmra.mrb[0].mxu0 %v1401
        %v1482 = vpop.f32.mrb[0].mxu0
        %v1483 = vadd.f32 0.0, %v1482
        %v1484 = vpop.f32.mrb[0].mxu0
        %1485 = vmatprep.mubr.f32.mxu0 0.0
        %1486 = vmatmul.mubr.f32.gmra.mrb[0].mxu0 %v1404
        %v1487 = vpop.f32.mrb[0].mxu0
        %v1488 = vadd.f32 0.0, %v1487
        %v1489 = vpop.f32.mrb[0].mxu0
        %1490 = vdwg.mxu0
        %v1491 = vadd.f32 %v1386, %v1473
        %v1492 = vadd.f32 %v1387, %v1478
        %v1493 = vadd.f32 %v1388, %v1483
        %v1494 = vadd.f32 %v1389, %v1488
        %s1495 = scalar_lea.vmem %s4, 144
        %v1496 = vld [vmem:[%s1495] sm:$0xff]
        %v1497 = vld [vmem:[%s1495 + $0x8] sm:$0xff]
        %v1498 = vld [vmem:[%s1495 + $0x10] sm:$0xff]
        %v1500 = vsel %vm880, %v815, 0
        %v1503 = vsel %vm880, %v820, 0
        %v1506 = vsel %vm880, %v825, 0
        %v1509 = vsel %vm880, %v830, 0
        %1511 = vmatprep.subr.mxu0 0.0
        %1512 = vmatpush1.msra.mxu0 %v1496
        %1513 = vmatprep.subr.mxu0 0.0
        %1514 = vmatpush1.msra.mxu0 %v1497
        %1515 = vmatprep.subr.mxu0 0.0
        %1516 = vmatpush1.msra.mxu0 %v1498
        %1517 = vmatprep.subr.mxu0 0.0
        %1518 = vmatpush1.msra.mxu0 0.0
        %1519 = vmatprep.subr.mxu0 0.0
        %1520 = vmatpush1.msra.mxu0 0.0
        %1521 = vmatprep.subr.mxu0 0.0
        %1522 = vmatpush1.msra.mxu0 0.0
        %1523 = vmatprep.subr.mxu0 0.0
        %1524 = vmatpush1.msra.mxu0 0.0
        %1525 = vmatprep.subr.mxu0 0.0
        %1526 = vmatpush1.msra.mxu0 0.0
        %1527 = vmatprep.subr.mxu0 0.0
        %1528 = vmatpush1.msra.mxu0 0.0
        %1529 = vmatprep.subr.mxu0 0.0
        %1530 = vmatpush1.msra.mxu0 0.0
        %1531 = vmatprep.subr.mxu0 0.0
        %1532 = vmatpush1.msra.mxu0 0.0
        %1533 = vmatprep.subr.mxu0 0.0
        %1534 = vmatpush1.msra.mxu0 0.0
        %1535 = vmatprep.subr.mxu0 0.0
        %1536 = vmatpush1.msra.mxu0 0.0
        %1537 = vmatprep.subr.mxu0 0.0
        %1538 = vmatpush1.msra.mxu0 0.0
        %1539 = vmatprep.subr.mxu0 0.0
        %1540 = vmatpush1.msra.mxu0 0.0
        %1541 = vmatprep.subr.mxu0 0.0
        %1542 = vmatpush1.msra.mxu0 0.0
        %1543 = vmatprep.subr.mxu0 0.0
        %1544 = vmatpush1.msra.mxu0 0.0
        %1545 = vmatprep.subr.mxu0 0.0
        %1546 = vmatpush1.msra.mxu0 0.0
        %1547 = vmatprep.subr.mxu0 0.0
        %1548 = vmatpush1.msra.mxu0 0.0
        %1549 = vmatprep.subr.mxu0 0.0
        %1550 = vmatpush1.msra.mxu0 0.0
        %1551 = vmatprep.subr.mxu0 0.0
        %1552 = vmatpush1.msra.mxu0 0.0
        %1553 = vmatprep.subr.mxu0 0.0
        %1554 = vmatpush1.msra.mxu0 0.0
        %1555 = vmatprep.subr.mxu0 0.0
        %1556 = vmatpush1.msra.mxu0 0.0
        %1557 = vmatprep.subr.mxu0 0.0
        %1558 = vmatpush1.msra.mxu0 0.0
        %1559 = vmatprep.subr.mxu0 0.0
        %1560 = vmatpush1.msra.mxu0 0.0
        %1561 = vmatprep.subr.mxu0 0.0
        %1562 = vmatpush1.msra.mxu0 0.0
        %1563 = vmatprep.subr.mxu0 0.0
        %1564 = vmatpush1.msra.mxu0 0.0
        %1565 = vmatprep.subr.mxu0 0.0
        %1566 = vmatpush1.msra.mxu0 0.0
        %1567 = vmatprep.subr.mxu0 0.0
        %1568 = vmatpush1.msra.mxu0 0.0
        %1569 = vmatprep.subr.mxu0 0.0
        %1570 = vmatpush1.msra.mxu0 0.0
        %1571 = vmatprep.subr.mxu0 0.0
        %1572 = vmatpush1.msra.mxu0 0.0
        %1573 = vmatprep.subr.mxu0 0.0
        %1574 = vmatpush1.msra.mxu0 0.0
        %1575 = vmatprep.mubr.f32.mxu0 0.0
        %1576 = vmatmul.mubr.f32.gmra.mrb[0].mxu0 %v1500
        %v1577 = vpop.f32.mrb[0].mxu0
        %v1578 = vadd.f32 0.0, %v1577
        %v1579 = vpop.f32.mrb[0].mxu0
        %1580 = vmatprep.mubr.f32.mxu0 0.0
        %1581 = vmatmul.mubr.f32.gmra.mrb[0].mxu0 %v1503
        %v1582 = vpop.f32.mrb[0].mxu0
        %v1583 = vadd.f32 0.0, %v1582
        %v1584 = vpop.f32.mrb[0].mxu0
        %1585 = vmatprep.mubr.f32.mxu0 0.0
        %1586 = vmatmul.mubr.f32.gmra.mrb[0].mxu0 %v1506
        %v1587 = vpop.f32.mrb[0].mxu0
        %v1588 = vadd.f32 0.0, %v1587
        %v1589 = vpop.f32.mrb[0].mxu0
        %1590 = vmatprep.mubr.f32.mxu0 0.0
        %1591 = vmatmul.mubr.f32.gmra.mrb[0].mxu0 %v1509
        %v1592 = vpop.f32.mrb[0].mxu0
        %v1593 = vadd.f32 0.0, %v1592
        %v1594 = vpop.f32.mrb[0].mxu0
        %1595 = vdwg.mxu0
        %v1596 = vadd.f32 %v1491, %v1578
        %v1597 = vadd.f32 %v1492, %v1583
        %v1598 = vadd.f32 %v1493, %v1588
        %v1599 = vadd.f32 %v1494, %v1593
        %s1600 = scalar_lea.vmem %s4, 168
        %v1601 = vld [vmem:[%s1600] sm:$0xff]
        %v1602 = vld [vmem:[%s1600 + $0x8] sm:$0xff]
        %v1603 = vld [vmem:[%s1600 + $0x10] sm:$0xff]
        %v1605 = vsel %vm880, %v835, 0
        %v1608 = vsel %vm880, %v840, 0
        %v1611 = vsel %vm880, %v845, 0
        %v1614 = vsel %vm880, %v850, 0
        %1616 = vmatprep.subr.mxu0 0.0
        %1617 = vmatpush1.msra.mxu0 %v1601
        %1618 = vmatprep.subr.mxu0 0.0
        %1619 = vmatpush1.msra.mxu0 %v1602
        %1620 = vmatprep.subr.mxu0 0.0
        %1621 = vmatpush1.msra.mxu0 %v1603
        %1622 = vmatprep.subr.mxu0 0.0
        %1623 = vmatpush1.msra.mxu0 0.0
        %1624 = vmatprep.subr.mxu0 0.0
        %1625 = vmatpush1.msra.mxu0 0.0
        %1626 = vmatprep.subr.mxu0 0.0
        %1627 = vmatpush1.msra.mxu0 0.0
        %1628 = vmatprep.subr.mxu0 0.0
        %1629 = vmatpush1.msra.mxu0 0.0
        %1630 = vmatprep.subr.mxu0 0.0
        %1631 = vmatpush1.msra.mxu0 0.0
        %1632 = vmatprep.subr.mxu0 0.0
        %1633 = vmatpush1.msra.mxu0 0.0
        %1634 = vmatprep.subr.mxu0 0.0
        %1635 = vmatpush1.msra.mxu0 0.0
        %1636 = vmatprep.subr.mxu0 0.0
        %1637 = vmatpush1.msra.mxu0 0.0
        %1638 = vmatprep.subr.mxu0 0.0
        %1639 = vmatpush1.msra.mxu0 0.0
        %1640 = vmatprep.subr.mxu0 0.0
        %1641 = vmatpush1.msra.mxu0 0.0
        %1642 = vmatprep.subr.mxu0 0.0
        %1643 = vmatpush1.msra.mxu0 0.0
        %1644 = vmatprep.subr.mxu0 0.0
        %1645 = vmatpush1.msra.mxu0 0.0
        %1646 = vmatprep.subr.mxu0 0.0
        %1647 = vmatpush1.msra.mxu0 0.0
        %1648 = vmatprep.subr.mxu0 0.0
        %1649 = vmatpush1.msra.mxu0 0.0
        %1650 = vmatprep.subr.mxu0 0.0
        %1651 = vmatpush1.msra.mxu0 0.0
        %1652 = vmatprep.subr.mxu0 0.0
        %1653 = vmatpush1.msra.mxu0 0.0
        %1654 = vmatprep.subr.mxu0 0.0
        %1655 = vmatpush1.msra.mxu0 0.0
        %1656 = vmatprep.subr.mxu0 0.0
        %1657 = vmatpush1.msra.mxu0 0.0
        %1658 = vmatprep.subr.mxu0 0.0
        %1659 = vmatpush1.msra.mxu0 0.0
        %1660 = vmatprep.subr.mxu0 0.0
        %1661 = vmatpush1.msra.mxu0 0.0
        %1662 = vmatprep.subr.mxu0 0.0
        %1663 = vmatpush1.msra.mxu0 0.0
        %1664 = vmatprep.subr.mxu0 0.0
        %1665 = vmatpush1.msra.mxu0 0.0
        %1666 = vmatprep.subr.mxu0 0.0
        %1667 = vmatpush1.msra.mxu0 0.0
        %1668 = vmatprep.subr.mxu0 0.0
        %1669 = vmatpush1.msra.mxu0 0.0
        %1670 = vmatprep.subr.mxu0 0.0
        %1671 = vmatpush1.msra.mxu0 0.0
        %1672 = vmatprep.subr.mxu0 0.0
        %1673 = vmatpush1.msra.mxu0 0.0
        %1674 = vmatprep.subr.mxu0 0.0
        %1675 = vmatpush1.msra.mxu0 0.0
        %1676 = vmatprep.subr.mxu0 0.0
        %1677 = vmatpush1.msra.mxu0 0.0
        %1678 = vmatprep.subr.mxu0 0.0
        %1679 = vmatpush1.msra.mxu0 0.0
        %1680 = vmatprep.mubr.f32.mxu0 0.0
        %1681 = vmatmul.mubr.f32.gmra.mrb[0].mxu0 %v1605
        %v1682 = vpop.f32.mrb[0].mxu0
        %v1683 = vadd.f32 0.0, %v1682
        %v1684 = vpop.f32.mrb[0].mxu0
        %1685 = vmatprep.mubr.f32.mxu0 0.0
        %1686 = vmatmul.mubr.f32.gmra.mrb[0].mxu0 %v1608
        %v1687 = vpop.f32.mrb[0].mxu0
        %v1688 = vadd.f32 0.0, %v1687
        %v1689 = vpop.f32.mrb[0].mxu0
        %1690 = vmatprep.mubr.f32.mxu0 0.0
        %1691 = vmatmul.mubr.f32.gmra.mrb[0].mxu0 %v1611
        %v1692 = vpop.f32.mrb[0].mxu0
        %v1693 = vadd.f32 0.0, %v1692
        %v1694 = vpop.f32.mrb[0].mxu0
        %1695 = vmatprep.mubr.f32.mxu0 0.0
        %1696 = vmatmul.mubr.f32.gmra.mrb[0].mxu0 %v1614
        %v1697 = vpop.f32.mrb[0].mxu0
        %v1698 = vadd.f32 0.0, %v1697
        %v1699 = vpop.f32.mrb[0].mxu0
        %1700 = vdwg.mxu0
        %v1701 = vadd.f32 %v1596, %v1683
        %v1702 = vadd.f32 %v1597, %v1688
        %v1703 = vadd.f32 %v1598, %v1693
        %v1704 = vadd.f32 %v1599, %v1698
        %s1705 = scalar_lea.vmem %s4, 192
        %v1706 = vld [vmem:[%s1705] sm:$0xff]
        %v1707 = vld [vmem:[%s1705 + $0x8] sm:$0xff]
        %v1708 = vld [vmem:[%s1705 + $0x10] sm:$0xff]
        %v1710 = vsel %vm880, %v855, 0
        %v1713 = vsel %vm880, %v860, 0
        %v1716 = vsel %vm880, %v865, 0
        %v1719 = vsel %vm880, %v870, 0
        %1721 = vmatprep.subr.mxu0 0.0
        %1722 = vmatpush1.msra.mxu0 %v1706
        %1723 = vmatprep.subr.mxu0 0.0
        %1724 = vmatpush1.msra.mxu0 %v1707
        %1725 = vmatprep.subr.mxu0 0.0
        %1726 = vmatpush1.msra.mxu0 %v1708
        %1727 = vmatprep.subr.mxu0 0.0
        %1728 = vmatpush1.msra.mxu0 0.0
        %1729 = vmatprep.subr.mxu0 0.0
        %1730 = vmatpush1.msra.mxu0 0.0
        %1731 = vmatprep.subr.mxu0 0.0
        %1732 = vmatpush1.msra.mxu0 0.0
        %1733 = vmatprep.subr.mxu0 0.0
        %1734 = vmatpush1.msra.mxu0 0.0
        %1735 = vmatprep.subr.mxu0 0.0
        %1736 = vmatpush1.msra.mxu0 0.0
        %1737 = vmatprep.subr.mxu0 0.0
        %1738 = vmatpush1.msra.mxu0 0.0
        %1739 = vmatprep.subr.mxu0 0.0
        %1740 = vmatpush1.msra.mxu0 0.0
        %1741 = vmatprep.subr.mxu0 0.0
        %1742 = vmatpush1.msra.mxu0 0.0
        %1743 = vmatprep.subr.mxu0 0.0
        %1744 = vmatpush1.msra.mxu0 0.0
        %1745 = vmatprep.subr.mxu0 0.0
        %1746 = vmatpush1.msra.mxu0 0.0
        %1747 = vmatprep.subr.mxu0 0.0
        %1748 = vmatpush1.msra.mxu0 0.0
        %1749 = vmatprep.subr.mxu0 0.0
        %1750 = vmatpush1.msra.mxu0 0.0
        %1751 = vmatprep.subr.mxu0 0.0
        %1752 = vmatpush1.msra.mxu0 0.0
        %1753 = vmatprep.subr.mxu0 0.0
        %1754 = vmatpush1.msra.mxu0 0.0
        %1755 = vmatprep.subr.mxu0 0.0
        %1756 = vmatpush1.msra.mxu0 0.0
        %1757 = vmatprep.subr.mxu0 0.0
        %1758 = vmatpush1.msra.mxu0 0.0
        %1759 = vmatprep.subr.mxu0 0.0
        %1760 = vmatpush1.msra.mxu0 0.0
        %1761 = vmatprep.subr.mxu0 0.0
        %1762 = vmatpush1.msra.mxu0 0.0
        %1763 = vmatprep.subr.mxu0 0.0
        %1764 = vmatpush1.msra.mxu0 0.0
        %1765 = vmatprep.subr.mxu0 0.0
        %1766 = vmatpush1.msra.mxu0 0.0
        %1767 = vmatprep.subr.mxu0 0.0
        %1768 = vmatpush1.msra.mxu0 0.0
        %1769 = vmatprep.subr.mxu0 0.0
        %1770 = vmatpush1.msra.mxu0 0.0
        %1771 = vmatprep.subr.mxu0 0.0
        %1772 = vmatpush1.msra.mxu0 0.0
        %1773 = vmatprep.subr.mxu0 0.0
        %1774 = vmatpush1.msra.mxu0 0.0
        %1775 = vmatprep.subr.mxu0 0.0
        %1776 = vmatpush1.msra.mxu0 0.0
        %1777 = vmatprep.subr.mxu0 0.0
        %1778 = vmatpush1.msra.mxu0 0.0
        %1779 = vmatprep.subr.mxu0 0.0
        %1780 = vmatpush1.msra.mxu0 0.0
        %1781 = vmatprep.subr.mxu0 0.0
        %1782 = vmatpush1.msra.mxu0 0.0
        %1783 = vmatprep.subr.mxu0 0.0
        %1784 = vmatpush1.msra.mxu0 0.0
        %1785 = vmatprep.mubr.f32.mxu0 0.0
        %1786 = vmatmul.mubr.f32.gmra.mrb[0].mxu0 %v1710
        %v1787 = vpop.f32.mrb[0].mxu0
        %v1788 = vadd.f32 0.0, %v1787
        %v1789 = vpop.f32.mrb[0].mxu0
        %1790 = vmatprep.mubr.f32.mxu0 0.0
        %1791 = vmatmul.mubr.f32.gmra.mrb[0].mxu0 %v1713
        %v1792 = vpop.f32.mrb[0].mxu0
        %v1793 = vadd.f32 0.0, %v1792
        %v1794 = vpop.f32.mrb[0].mxu0
        %1795 = vmatprep.mubr.f32.mxu0 0.0
        %1796 = vmatmul.mubr.f32.gmra.mrb[0].mxu0 %v1716
        %v1797 = vpop.f32.mrb[0].mxu0
        %v1798 = vadd.f32 0.0, %v1797
        %v1799 = vpop.f32.mrb[0].mxu0
        %1800 = vmatprep.mubr.f32.mxu0 0.0
        %1801 = vmatmul.mubr.f32.gmra.mrb[0].mxu0 %v1719
        %v1802 = vpop.f32.mrb[0].mxu0
        %v1803 = vadd.f32 0.0, %v1802
        %v1804 = vpop.f32.mrb[0].mxu0
        %1805 = vdwg.mxu0
        %v1806 = vadd.f32 %v1701, %v1788
        %v1807 = vadd.f32 %v1702, %v1793
        %v1808 = vadd.f32 %v1703, %v1798
        %v1809 = vadd.f32 %v1704, %v1803
        %v1810 = vmax.f32 %v1806, %v1807
        %v1811 = vmax.f32 %v1810, %v1808
        %v1812 = vmax.f32 %v1811, %v1809
        %v1813 = vld [vmem:[%s5] sm:$0x1]
        %v1815 = vlaneseq
        %v1816 = vshrl.u32 %v1815, 7
        %v1817 = vsub.s32 0, %v1816
        %v1818 = vrot.slane %v1813, %v1817
        %v1820 = vadd.f32 %v1812, %v1818
        %v1821 = vmax.f32 %v1820, 0.0
        %vm1822 = vcmask 60416
        %1823 = vst.msk [vmem:[%s244] sm:$0xf] %vm1822, %v1821
        %s1824 = sand.u32 %s159, 1
        %s1825 = scalar_lea.sflag [#allocation3], %s1824
        %s1826 = sand.u32 %s159, 1
        %s1827 = smul.addr %s1826, 4
        %s1828 = scalar_lea.vmem [#allocation2], %s1827
        // Predicated region
        $region45: #{features_detector.1} parent=43 // pred_check
          %p1829 = pneg %p169
        $region46: #{features_detector.1} parent=43 // pred_check_branch
          %1831 = sbr.rel (%p1829) target = $region48
        $region47: #{features_detector.1} parent=43 // pred_region
          %s1833 = ssub.s32 64, 64
          %1834 = vsyncadd %s1825, %s1833
          %s1835 = smul.addr %s20, 64
          %s1836 = scalar_lea.hbm %s6, %s1835
          %s1838 = sshll.u32 %s1828, 4
          %s1839 = int_to_ptr.vmem [resolvable:$true] %s1838
          %1841 = dma.vmem_to_hbm [thread:$0]  %s1839, 64, %s1836, %s1825
        $region48: #{features_detector.1} parent=43 // pred_fallthru
          _
      $region44: #{features_detector.1} parent=5 // pred_fallthru
        _
      %p1842 = scmp.le.s32.totalorder 2, %s15
      // Predicated region
      $region49: #{features_detector.1} parent=5 // pred_check
        %p1843 = pneg %p1842
      $region50: #{features_detector.1} parent=5 // pred_check_branch
        %1845 = sbr.rel (%p1843) target = $region52
      $region51: #{features_detector.1} parent=5 // pred_region
        %s1846 = ssub.s32 %s15, 2
        // Predicated region
        $region53: #{features_detector.1} parent=51 // pred_check
          %p1847 = pneg %p175
        $region54: #{features_detector.1} parent=51 // pred_check_branch
          %1849 = sbr.rel (%p1847) target = $region56
        $region55: #{features_detector.1} parent=51 // pred_region
          %s1850 = sand.u32 %s160, 1
          %s1851 = scalar_lea.sflag [#allocation3], %s1850
          %s1852 = sand.u32 %s160, 1
          %s1853 = smul.addr %s1852, 4
          %s1854 = scalar_lea.vmem [#allocation2], %s1853
          %1855 = dma.done %s1851, 64
        $region56: #{features_detector.1} parent=51 // pred_fallthru
          _
      $region52: #{features_detector.1} parent=5 // pred_fallthru
        _
    $region6: #{features_detector.1} parent=1 // loop_footer
      %s19 = sadd.s32 1, %s15
    $region7: #{features_detector.1} parent=1 // loop_footer_branch
      %14 = sbr.rel target = $region3
    $region8: #{features_detector.1} parent=1 // loop_exit
      _
    %1856 = vsyncpa [#allocation3], 1
    %s1857 = scalar_lea.sflag [#allocation3], 1
    %1858 = vsyncpa %s1857, 1

</llo_original>
